<compile_context>
chip_gen: v7x
topology: tpu7x:2x2x1
jax: 0.10.0
libtpu: 0.0.40
codegen_flags: <defaults>
</compile_context>

<pallas_src>
import jax
import jax.numpy as jnp
from jax import lax
from jax.experimental import pallas as pl
from jax.experimental.pallas import tpu as pltpu


def fullhistory_kernel(idx_ref, table_ref, scorers_ref, out_ref):
    """Fused gather + scorers/5 for one batch tile.

    idx_ref:     VMEM i32 (n_blk, 1)   flat row indices, slot-major per tile:
                                       row = slot * batch_tile + within_tile_row
    table_ref:   VMEM f32 (rows, E)    combined [item_table ; user_table]
    scorers_ref: VMEM f32 (bt, M)      raw scores for this batch tile
    out_ref:     VMEM f32 (bt, (M+1)*E + M)  fused, lane-dense output block
    """
    rows, emb_dim = table_ref.shape
    bt, m = scorers_ref.shape
    num_slots = (out_ref.shape[1] - m) // emb_dim          # == M + 1

    idx = idx_ref[...]                                     # (n_blk, 1)
    n_blk = idx.shape[0]

    # (n_blk, rows) one-hot on the VPU; one MXU matmul performs the gather.
    iota = lax.broadcasted_iota(jnp.int32, (n_blk, rows), 1)
    onehot = (iota == idx).astype(table_ref.dtype)
    emb = jnp.dot(onehot, table_ref[...],
                  preferred_element_type=jnp.float32,
                  precision=lax.Precision.HIGHEST)          # (n_blk, E), exact
    emb = emb.astype(out_ref.dtype)

    # Slot-major layout -> contiguous sublane slices, static column stores.
    for s in range(num_slots):
        out_ref[:, s * emb_dim:(s + 1) * emb_dim] = emb[s * bt:(s + 1) * bt, :]

    # Tail columns: scorers / 5 (VPU).
    out_ref[:, num_slots * emb_dim:] = (scorers_ref[...] / 5.0).astype(out_ref.dtype)


def fullhistory_forward(user, memory, scorers, item_table, user_table,
                        *, batch_tile=32):
    """Pallas-backed FullHistory.forward.

    Returns (B, (M+1)*E + M) exactly matching the PyTorch concat order
    [item_0 .. item_{M-1}, user, scorers/5].
    """
    B, M = memory.shape
    E = item_table.shape[1]
    item_rows = item_table.shape[0]          # item_num + 1 (padding row last)
    user_rows = user_table.shape[0]
    rows = item_rows + user_rows
    dtype = item_table.dtype
    S = M + 1
    emb_cols = S * E
    out_dim = emb_cols + M

    # Don't over-pad tiny batches; keep the tile a multiple of 8 sublanes.
    batch_tile = max(8, min(batch_tile, ((B + 7) // 8) * 8))
    assert batch_tile % 8 == 0
    num_tiles = pl.cdiv(B, batch_tile)
    b_pad = num_tiles * batch_tile
    pad = b_pad - B

    # Combined gather table: [item rows ; user rows].
    table = jnp.concatenate([item_table, user_table], axis=0)     # (rows, E)

    # Flat per-(batch, slot) indices; clamp like jnp.take, offset user ids.
    mem_idx = jnp.clip(memory.astype(jnp.int32), 0, item_rows - 1)
    usr_idx = jnp.clip(user.astype(jnp.int32), 0, user_rows - 1) + item_rows
    idx2d = jnp.concatenate([mem_idx, usr_idx[:, None]], axis=1)  # (B, S)
    scorers_p = scorers
    if pad:
        idx2d = jnp.pad(idx2d, ((0, pad), (0, 0)),
                        constant_values=item_rows - 1)            # padding row
        scorers_p = jnp.pad(scorers_p, ((0, pad), (0, 0)))

    # Slot-major ordering within each batch tile so the kernel can write the
    # fused output with contiguous static slices (no in-kernel relayout).
    flat_idx = (idx2d.reshape(num_tiles, batch_tile, S)
                      .transpose(0, 2, 1)
                      .reshape(b_pad * S, 1))                     # (Bp*S, 1)

    n_blk = batch_tile * S

    out = pl.pallas_call(
        fullhistory_kernel,
        out_shape=jax.ShapeDtypeStruct((b_pad, out_dim), dtype),
        grid_spec=pltpu.PrefetchScalarGridSpec(
            num_scalar_prefetch=0,
            grid=(num_tiles,),
            in_specs=[
                pl.BlockSpec((n_blk, 1), lambda b: (b, 0)),       # indices
                pl.BlockSpec((rows, E), lambda b: (0, 0)),        # table (resident)
                pl.BlockSpec((batch_tile, M), lambda b: (b, 0)),  # scorers
            ],
            out_specs=pl.BlockSpec((batch_tile, out_dim), lambda b: (b, 0)),
        ),
        compiler_params=pltpu.CompilerParams(
            dimension_semantics=("parallel",)),
    )(flat_idx, table, scorers_p)

    return out[:B]


def fullhistory_reference(user, memory, scorers, item_table, user_table):
    item_emb = jnp.take(item_table, memory, axis=0)           # (B, M, E)
    user_emb = jnp.take(user_table, user, axis=0)[:, None]    # (B, 1, E)
    cat = jnp.concatenate([item_emb, user_emb], axis=1)       # (B, M+1, E)
    out = cat.reshape(cat.shape[0], -1)
    return jnp.concatenate([out, scorers / 5.0], axis=1)


if __name__ == "__main__":
    # Small, module-consistent shapes; B=40 with batch_tile=32 exercises the
    # multi-tile grid and the batch-padding path.
    batch = 40
    memory_size = 8
    embedding_dim = 32
    user_num = 16
    item_num = 64

    key = jax.random.PRNGKey(0)
    k_u, k_i, k_mem, k_usr, k_sc = jax.random.split(key, 5)

    # Deterministic parameter init mirroring FullHistory.initialize():
    #   normal(std=0.01) embeddings; last item row is the padding row (zeros).
    user_table = 0.01 * jax.random.normal(k_u, (user_num, embedding_dim),
                                          dtype=jnp.float32)
    item_table = 0.01 * jax.random.normal(k_i, (item_num + 1, embedding_dim),
                                          dtype=jnp.float32)
    item_table = item_table.at[item_num].set(0.0)   # padding_idx row

    # Example inputs.
    memory = jax.random.randint(k_mem, (batch, memory_size), 0, item_num + 1,
                                dtype=jnp.int32)
    user = jax.random.randint(k_usr, (batch,), 0, user_num, dtype=jnp.int32)
    scorers = jax.random.randint(k_sc, (batch, memory_size), 0, 6,
                                 dtype=jnp.int32).astype(jnp.float32)

    out = fullhistory_forward(user, memory, scorers, item_table, user_table,
                              batch_tile=32)
    out = jax.block_until_ready(out)

    ref = fullhistory_reference(user, memory, scorers, item_table, user_table)
    assert out.shape == (batch, (memory_size + 1) * embedding_dim + memory_size)
    assert jnp.allclose(out, ref, atol=1e-6, rtol=1e-6), "mismatch vs reference"

    print("KERNEL_OK")
</pallas_src>

<mosaic_0001>
module attributes {stable_mosaic.version = 11 : i64} {
  func.func @fullhistory_kernel(%arg0: i32, %arg1: memref<288x1xi32, #tpu.memory_space<vmem>>, %arg2: memref<81x32xf32, #tpu.memory_space<vmem>>, %arg3: memref<32x8xf32, #tpu.memory_space<vmem>>, %arg4: memref<32x296xf32, #tpu.memory_space<vmem>>) attributes {dimension_semantics = [#tpu.dimension_semantics<parallel>], iteration_bounds = array<i64: 2>, scalar_prefetch = 0 : i64, scratch_operands = 0 : i64, tpu.core_type = #tpu.core_type<tc>, window_params = [{transform_indices = @transform_0, window_bounds = array<i64: 288, 1>}, {pipeline_mode = #tpu.pipeline_mode<synchronous>, transform_indices = @transform_1, window_bounds = array<i64: 81, 32>}, {transform_indices = @transform_2, window_bounds = array<i64: 32, 8>}, {transform_indices = @transform_3, window_bounds = array<i64: 32, 296>}]} {
    %c0 = arith.constant 0 : index
    %c0_0 = arith.constant 0 : index
    %0 = vector.load %arg1[%c0, %c0_0] : memref<288x1xi32, #tpu.memory_space<vmem>>, vector<288x1xi32>
    %1 = tpu.iota {dimensions = array<i32: 1>} : vector<288x81xi32>
    %2 = vector.broadcast %0 : vector<288x1xi32> to vector<288x81xi32>
    %3 = arith.cmpi eq, %1, %2 : vector<288x81xi32>
    %4 = arith.extui %3 : vector<288x81xi1> to vector<288x81xi32>
    %5 = arith.sitofp %4 : vector<288x81xi32> to vector<288x81xf32>
    %c0_1 = arith.constant 0 : index
    %c0_2 = arith.constant 0 : index
    %6 = vector.load %arg2[%c0_1, %c0_2] : memref<81x32xf32, #tpu.memory_space<vmem>>, vector<81x32xf32>
    %cst = arith.constant dense<0.000000e+00> : vector<288x32xf32>
    %7 = tpu.matmul %5, %6, %cst {dimension_numbers = #tpu.dot_dimension_numbers<[1], [0], [0], [1], [0, 0, 1, 1], [], []>, precision = #tpu.contract_precision<fp32>} : vector<288x81xf32>, vector<81x32xf32>, vector<288x32xf32> -> vector<288x32xf32>
    %8 = vector.extract_strided_slice %7 {offsets = [0, 0], sizes = [32, 32], strides = [1, 1]} : vector<288x32xf32> to vector<32x32xf32>
    %c0_3 = arith.constant 0 : index
    %c0_4 = arith.constant 0 : index
    %9 = vector.load %arg4[%c0_3, %c0_4] : memref<32x296xf32, #tpu.memory_space<vmem>>, vector<32x32xf32>
    tpu.vector_store %arg4[%c0_3, %c0_4], %8 {strides = array<i32>} : memref<32x296xf32, #tpu.memory_space<vmem>>, vector<32x32xf32>,
    %10 = vector.extract_strided_slice %7 {offsets = [32, 0], sizes = [32, 32], strides = [1, 1]} : vector<288x32xf32> to vector<32x32xf32>
    %c0_5 = arith.constant 0 : index
    %c32 = arith.constant 32 : index
    %11 = vector.load %arg4[%c0_5, %c32] : memref<32x296xf32, #tpu.memory_space<vmem>>, vector<32x32xf32>
    tpu.vector_store %arg4[%c0_5, %c32], %10 {strides = array<i32>} : memref<32x296xf32, #tpu.memory_space<vmem>>, vector<32x32xf32>,
    %12 = vector.extract_strided_slice %7 {offsets = [64, 0], sizes = [32, 32], strides = [1, 1]} : vector<288x32xf32> to vector<32x32xf32>
    %c0_6 = arith.constant 0 : index
    %c64 = arith.constant 64 : index
    %13 = vector.load %arg4[%c0_6, %c64] : memref<32x296xf32, #tpu.memory_space<vmem>>, vector<32x32xf32>
    tpu.vector_store %arg4[%c0_6, %c64], %12 {strides = array<i32>} : memref<32x296xf32, #tpu.memory_space<vmem>>, vector<32x32xf32>,
    %14 = vector.extract_strided_slice %7 {offsets = [96, 0], sizes = [32, 32], strides = [1, 1]} : vector<288x32xf32> to vector<32x32xf32>
    %c0_7 = arith.constant 0 : index
    %c96 = arith.constant 96 : index
    %15 = vector.load %arg4[%c0_7, %c96] : memref<32x296xf32, #tpu.memory_space<vmem>>, vector<32x32xf32>
    tpu.vector_store %arg4[%c0_7, %c96], %14 {strides = array<i32>} : memref<32x296xf32, #tpu.memory_space<vmem>>, vector<32x32xf32>,
    %16 = vector.extract_strided_slice %7 {offsets = [128, 0], sizes = [32, 32], strides = [1, 1]} : vector<288x32xf32> to vector<32x32xf32>
    %c0_8 = arith.constant 0 : index
    %c128 = arith.constant 128 : index
    %17 = vector.load %arg4[%c0_8, %c128] : memref<32x296xf32, #tpu.memory_space<vmem>>, vector<32x32xf32>
    tpu.vector_store %arg4[%c0_8, %c128], %16 {strides = array<i32>} : memref<32x296xf32, #tpu.memory_space<vmem>>, vector<32x32xf32>,
    %18 = vector.extract_strided_slice %7 {offsets = [160, 0], sizes = [32, 32], strides = [1, 1]} : vector<288x32xf32> to vector<32x32xf32>
    %c0_9 = arith.constant 0 : index
    %c160 = arith.constant 160 : index
    %19 = vector.load %arg4[%c0_9, %c160] : memref<32x296xf32, #tpu.memory_space<vmem>>, vector<32x32xf32>
    tpu.vector_store %arg4[%c0_9, %c160], %18 {strides = array<i32>} : memref<32x296xf32, #tpu.memory_space<vmem>>, vector<32x32xf32>,
    %20 = vector.extract_strided_slice %7 {offsets = [192, 0], sizes = [32, 32], strides = [1, 1]} : vector<288x32xf32> to vector<32x32xf32>
    %c0_10 = arith.constant 0 : index
    %c192 = arith.constant 192 : index
    %21 = vector.load %arg4[%c0_10, %c192] : memref<32x296xf32, #tpu.memory_space<vmem>>, vector<32x32xf32>
    tpu.vector_store %arg4[%c0_10, %c192], %20 {strides = array<i32>} : memref<32x296xf32, #tpu.memory_space<vmem>>, vector<32x32xf32>,
    %22 = vector.extract_strided_slice %7 {offsets = [224, 0], sizes = [32, 32], strides = [1, 1]} : vector<288x32xf32> to vector<32x32xf32>
    %c0_11 = arith.constant 0 : index
    %c224 = arith.constant 224 : index
    %23 = vector.load %arg4[%c0_11, %c224] : memref<32x296xf32, #tpu.memory_space<vmem>>, vector<32x32xf32>
    tpu.vector_store %arg4[%c0_11, %c224], %22 {strides = array<i32>} : memref<32x296xf32, #tpu.memory_space<vmem>>, vector<32x32xf32>,
    %24 = vector.extract_strided_slice %7 {offsets = [256, 0], sizes = [32, 32], strides = [1, 1]} : vector<288x32xf32> to vector<32x32xf32>
    %c0_12 = arith.constant 0 : index
    %c256 = arith.constant 256 : index
    %25 = vector.load %arg4[%c0_12, %c256] : memref<32x296xf32, #tpu.memory_space<vmem>>, vector<32x32xf32>
    tpu.vector_store %arg4[%c0_12, %c256], %24 {strides = array<i32>} : memref<32x296xf32, #tpu.memory_space<vmem>>, vector<32x32xf32>,
    %c0_13 = arith.constant 0 : index
    %c0_14 = arith.constant 0 : index
    %26 = vector.load %arg3[%c0_13, %c0_14] : memref<32x8xf32, #tpu.memory_space<vmem>>, vector<32x8xf32>
    %cst_15 = arith.constant 5.000000e+00 : f32
    %27 = vector.broadcast %cst_15 : f32 to vector<32x8xf32>
    %28 = arith.divf %26, %27 : vector<32x8xf32>
    %c0_16 = arith.constant 0 : index
    %c288 = arith.constant 288 : index
    %29 = vector.load %arg4[%c0_16, %c288] : memref<32x296xf32, #tpu.memory_space<vmem>>, vector<32x8xf32>
    tpu.vector_store %arg4[%c0_16, %c288], %28 {strides = array<i32>} : memref<32x296xf32, #tpu.memory_space<vmem>>, vector<32x8xf32>,
    return
  }
  func.func @transform_0(%arg0: i32) -> (i32, i32) {
    %c0_i32 = arith.constant 0 : i32
    %c0_i32_0 = arith.constant 0 : i32
    return %arg0, %c0_i32 : i32, i32
  }
  func.func @transform_1(%arg0: i32) -> (i32, i32) {
    %c0_i32 = arith.constant 0 : i32
    %c0_i32_0 = arith.constant 0 : i32
    %c0_i32_1 = arith.constant 0 : i32
    return %c0_i32, %c0_i32_0 : i32, i32
  }
  func.func @transform_2(%arg0: i32) -> (i32, i32) {
    %c0_i32 = arith.constant 0 : i32
    %c0_i32_0 = arith.constant 0 : i32
    return %arg0, %c0_i32 : i32, i32
  }
  func.func @transform_3(%arg0: i32) -> (i32, i32) {
    %c0_i32 = arith.constant 0 : i32
    %c0_i32_0 = arith.constant 0 : i32
    return %arg0, %c0_i32 : i32, i32
  }
}

</mosaic_0001>

<llo_original>
// kernel: tpu_custom_call.1
$region0: #{tpu_custom_call.1}
  #allocation0 [shape = 'u32[]', space=smem, size = 0x4, offset = 0x4, fixed_abs, tag = 'smem constant byte address 0x4 - core index']
  #allocation1 [shape = 'u32[144,128]{1,0:T(1,128)}', space=vmem, size = 0x12000, scoped, tag = 'internal scratch']
  %s0 = inlined_call_operand.vmem [shape: s32[576,1], index: 0, kind: input, shape index: {}]
  %s1 = inlined_call_operand.vmem [shape: f32[81,32], index: 1, kind: input, shape index: {}]
  %s2 = inlined_call_operand.vmem [shape: f32[64,8], index: 2, kind: input, shape index: {}]
  %s3 = inlined_call_operand.hbm [shape: f32[64,296], index: 3, kind: output, shape index: {}]
  %s4 = sld [smem:[#allocation0]]
  $region45: #{tpu_custom_call.1} parent=0
    _
  %s6 = ssub.s32 1, %s4
  %s7 = scalar_select 0, %s6, %s4
  $region1: #{tpu_custom_call.1} parent=0
    #allocation2 [shape = 'u8[98304]{0}', space=vmem, size = 0x18000, scoped, tag = 'output window, operand 0']
    #allocation3 [shape = 's32[2]{0}', space=sflag, size = 0x8, scoped, tag = 'scoped memory for tpu_custom_call.1']
    %8 = vsyncpa [#allocation3], 0
    %s9 = scalar_lea.sflag [#allocation3], 1
    %10 = vsyncpa %s9, 0
    loop: start=0, step=1, limit=4
    $region2: #{tpu_custom_call.1} parent=1 // loop_pre_header
      _
    $region3: #{tpu_custom_call.1} parent=1 // loop_header
      %s12 = sphi 0, %s16
      %p13 = scmp.ge.s32.totalorder %s12, 4
      %s22 = sphi 0, %s24
      %s25 = sphi 0, %s22
      %s26 = sphi 0, %s25
      %s42 = sphi 0, %s26
      %s46 = sphi 0, %s46
      %s48 = sphi 0, %s46
      %s49 = sphi 0, %s48
      %s63 = sphi 0, %s49
      %s69 = sphi 0, %s71
      %s72 = sphi 0, %s69
      %s73 = sphi 0, %s72
      %s89 = sphi 0, %s73
      %s95 = sphi 0, %s97
      %s98 = sphi 0, %s95
      %s99 = sphi 0, %s98
      %s115 = sphi 0, %s99
    $region4: #{tpu_custom_call.1} parent=1 // loop_header_branch
      %15 = sbr.rel (%p13) target = $region8
    $region5: #{tpu_custom_call.1} parent=1 // loop_body
      %s17 = ssub.s32 %s12, 1
      %s18 = ssub.s32 %s12, 2
      %s19 = sadd.s32 %s12, 1
      %s20 = ssub.s32 %s12, %s19
      %p21 = scmp.eq.s32.totalorder %s20, 0
      %s23 = sadd.s32 %s22, 1
      %s24 = scalar_select %p21, %s22, %s23
      %p27 = pneg %p21
      %p28 = scmp.eq.s32.totalorder %s12, 1
      %p29 = por %p27, %p28
      %p30 = scmp.ne.s32.totalorder %s22, %s25
      %p31 = scmp.eq.s32.totalorder %s12, 0
      %p32 = por %p30, %p31
      %p33 = scmp.ne.s32.totalorder %s22, %s25
      %p34 = scmp.eq.s32.totalorder %s17, 1
      %p35 = por %p33, %p34
      %p36 = scmp.ne.s32.totalorder %s25, %s26
      %p37 = scmp.eq.s32.totalorder %s17, 0
      %p38 = por %p36, %p37
      %p39 = scmp.ne.s32.totalorder %s25, %s26
      %p40 = scmp.eq.s32.totalorder %s18, 1
      %p41 = por %p39, %p40
      %p43 = scmp.ne.s32.totalorder %s26, %s42
      %p44 = scmp.eq.s32.totalorder %s18, 0
      %p45 = por %p43, %p44
      %s47 = sadd.s32 %s46, 1
      %p50 = scmp.eq.s32.totalorder %s12, 1
      %p51 = scmp.ne.s32.totalorder %s46, %s48
      %p52 = scmp.eq.s32.totalorder %s12, 0
      %p53 = por %p51, %p52
      %p54 = scmp.ne.s32.totalorder %s46, %s48
      %p55 = scmp.eq.s32.totalorder %s17, 1
      %p56 = por %p54, %p55
      %p57 = scmp.ne.s32.totalorder %s48, %s49
      %p58 = scmp.eq.s32.totalorder %s17, 0
      %p59 = por %p57, %p58
      %p60 = scmp.ne.s32.totalorder %s48, %s49
      %p61 = scmp.eq.s32.totalorder %s18, 1
      %p62 = por %p60, %p61
      %p64 = scmp.ne.s32.totalorder %s49, %s63
      %p65 = scmp.eq.s32.totalorder %s18, 0
      %p66 = por %p64, %p65
      %s67 = ssub.s32 %s12, %s19
      %p68 = scmp.eq.s32.totalorder %s67, 0
      %s70 = sadd.s32 %s69, 1
      %s71 = scalar_select %p68, %s69, %s70
      %p74 = pneg %p68
      %p75 = scmp.eq.s32.totalorder %s12, 1
      %p76 = por %p74, %p75
      %p77 = scmp.ne.s32.totalorder %s69, %s72
      %p78 = scmp.eq.s32.totalorder %s12, 0
      %p79 = por %p77, %p78
      %p80 = scmp.ne.s32.totalorder %s69, %s72
      %p81 = scmp.eq.s32.totalorder %s17, 1
      %p82 = por %p80, %p81
      %p83 = scmp.ne.s32.totalorder %s72, %s73
      %p84 = scmp.eq.s32.totalorder %s17, 0
      %p85 = por %p83, %p84
      %p86 = scmp.ne.s32.totalorder %s72, %s73
      %p87 = scmp.eq.s32.totalorder %s18, 1
      %p88 = por %p86, %p87
      %p90 = scmp.ne.s32.totalorder %s73, %s89
      %p91 = scmp.eq.s32.totalorder %s18, 0
      %p92 = por %p90, %p91
      %s93 = ssub.s32 %s12, %s19
      %p94 = scmp.eq.s32.totalorder %s93, 0
      %s96 = sadd.s32 %s95, 1
      %s97 = scalar_select %p94, %s95, %s96
      %p100 = pneg %p94
      %p101 = scmp.eq.s32.totalorder %s12, 1
      %p102 = por %p100, %p101
      %p103 = scmp.ne.s32.totalorder %s95, %s98
      %p104 = scmp.eq.s32.totalorder %s12, 0
      %p105 = por %p103, %p104
      %p106 = scmp.ne.s32.totalorder %s95, %s98
      %p107 = scmp.eq.s32.totalorder %s17, 1
      %p108 = por %p106, %p107
      %p109 = scmp.ne.s32.totalorder %s98, %s99
      %p110 = scmp.eq.s32.totalorder %s17, 0
      %p111 = por %p109, %p110
      %p112 = scmp.ne.s32.totalorder %s98, %s99
      %p113 = scmp.eq.s32.totalorder %s18, 1
      %p114 = por %p112, %p113
      %p116 = scmp.ne.s32.totalorder %s99, %s115
      %p117 = scmp.eq.s32.totalorder %s18, 0
      %p118 = por %p116, %p117
      %p119 = scmp.le.s32.totalorder 1, %s12
      %p120 = scmp.lt.s32.totalorder %s12, 3
      %p121 = pnand %p119, %p120
      %p122 = pneg %p121
      // Predicated region
      $region9: #{tpu_custom_call.1} parent=5 // pred_check
        _
      $region10: #{tpu_custom_call.1} parent=5 // pred_check_branch
        %124 = sbr.rel (%p121) target = $region12
      $region11: #{tpu_custom_call.1} parent=5 // pred_region
        %s125 = ssub.s32 %s12, 1
        // Predicated region
        $region13: #{tpu_custom_call.1} parent=11 // pred_check
          %p126 = pneg %p59
        $region14: #{tpu_custom_call.1} parent=11 // pred_check_branch
          %128 = sbr.rel (%p126) target = $region16
        $region15: #{tpu_custom_call.1} parent=11 // pred_region
          _
        $region16: #{tpu_custom_call.1} parent=11 // pred_fallthru
          _
      $region12: #{tpu_custom_call.1} parent=5 // pred_fallthru
        _
      %p129 = scmp.lt.s32.totalorder %s12, 2
      // Predicated region
      $region17: #{tpu_custom_call.1} parent=5 // pred_check
        %p130 = pneg %p129
      $region18: #{tpu_custom_call.1} parent=5 // pred_check_branch
        %132 = sbr.rel (%p130) target = $region20
      $region19: #{tpu_custom_call.1} parent=5 // pred_region
        // Predicated region
        $region21: #{tpu_custom_call.1} parent=19 // pred_check
          %p133 = pneg %p32
        $region22: #{tpu_custom_call.1} parent=19 // pred_check_branch
          %135 = sbr.rel (%p133) target = $region24
        $region23: #{tpu_custom_call.1} parent=19 // pred_region
          %s136 = smul.u32 36, %s12
          %p137 = scmp.lt.s32.totalorder %s136, 71
          %s138 = scalar_select %p137, %s136, 71
          %s139 = smul.addr %s138, 8
          %s140 = scalar_lea.vmem %s0, %s139
          %s141 = smul.u32 36, %s12
        $region24: #{tpu_custom_call.1} parent=19 // pred_fallthru
          _
        // Predicated region
        $region25: #{tpu_custom_call.1} parent=19 // pred_check
          %p142 = pneg %p79
        $region26: #{tpu_custom_call.1} parent=19 // pred_check_branch
          %144 = sbr.rel (%p142) target = $region28
        $region27: #{tpu_custom_call.1} parent=19 // pred_region
          %s145 = smul.u32 4, %s12
          %p146 = scmp.lt.s32.totalorder %s145, 7
          %s147 = scalar_select %p146, %s145, 7
          %s148 = smul.addr %s147, 8
          %s149 = scalar_lea.vmem %s2, %s148
          %s150 = smul.u32 4, %s12
        $region28: #{tpu_custom_call.1} parent=19 // pred_fallthru
          _
      $region20: #{tpu_custom_call.1} parent=5 // pred_fallthru
        _
      %p151 = scmp.le.s32.totalorder 1, %s12
      %p152 = scmp.lt.s32.totalorder %s12, 3
      %p153 = pnand %p151, %p152
      %p154 = pneg %p153
      // Predicated region
      $region29: #{tpu_custom_call.1} parent=5 // pred_check
        _
      $region30: #{tpu_custom_call.1} parent=5 // pred_check_branch
        %156 = sbr.rel (%p153) target = $region32
      $region31: #{tpu_custom_call.1} parent=5 // pred_region
        %s157 = ssub.s32 %s12, 1
        %s158 = smul.u32 36, %s17
        %p159 = scmp.lt.s32.totalorder %s158, 71
        %s160 = scalar_select %p159, %s158, 71
        %s161 = smul.addr %s160, 8
        %s162 = scalar_lea.vmem %s0, %s161
        %p163 = pneg %p38
        %p164 = pneg %p35
        %p165 = pneg %p59
        %p166 = pneg %p56
        %s167 = smul.u32 4, %s17
        %p168 = scmp.lt.s32.totalorder %s167, 7
        %s169 = scalar_select %p168, %s167, 7
        %s170 = smul.addr %s169, 8
        %s171 = scalar_lea.vmem %s2, %s170
        %p172 = pneg %p85
        %p173 = pneg %p82
        %p174 = pneg %p111
        %p175 = pneg %p108
        %s176 = sand.u32 %s98, 1
        %s177 = scalar_lea.sflag [#allocation3], %s176
        %s178 = sand.u32 %s98, 1
        %s179 = smul.addr %s178, 96
        %s180 = scalar_lea.vmem [#allocation2], %s179
        %s181 = smul.u32 36, %s17
        %p182 = scmp.lt.s32.totalorder %s181, 71
        %s183 = scalar_select %p182, %s181, 71
        %s184 = smul.addr %s183, 8
        %s185 = scalar_lea.vmem %s0, %s184
        %s186 = smul.u32 36, %s17
        %s187 = smul.u32 4, %s17
        %p188 = scmp.lt.s32.totalorder %s187, 7
        %s189 = scalar_select %p188, %s187, 7
        %s190 = smul.addr %s189, 8
        %s191 = scalar_lea.vmem %s2, %s190
        %s192 = smul.u32 4, %s17
        %s193 = smul.u32 4, %s17
        %v194 = vld [vmem:[%s185] sm:$0xff]
        %v195 = vld [vmem:[%s185 + $0x8] sm:$0xff]
        %v196 = vld [vmem:[%s185 + $0x10] sm:$0xff]
        %v197 = vld [vmem:[%s185 + $0x18] sm:$0xff]
        %v198 = vld [vmem:[%s185 + $0x20] sm:$0xff]
        %v199 = vld [vmem:[%s185 + $0x28] sm:$0xff]
        %v200 = vld [vmem:[%s185 + $0x30] sm:$0xff]
        %v201 = vld [vmem:[%s185 + $0x38] sm:$0xff]
        %v202 = vld [vmem:[%s185 + $0x40] sm:$0xff]
        %v203 = vld [vmem:[%s185 + $0x48] sm:$0xff]
        %v204 = vld [vmem:[%s185 + $0x50] sm:$0xff]
        %v205 = vld [vmem:[%s185 + $0x58] sm:$0xff]
        %v206 = vld [vmem:[%s185 + $0x60] sm:$0xff]
        %v207 = vld [vmem:[%s185 + $0x68] sm:$0xff]
        %v208 = vld [vmem:[%s185 + $0x70] sm:$0xff]
        %v209 = vld [vmem:[%s185 + $0x78] sm:$0xff]
        %v210 = vld [vmem:[%s185 + $0x80] sm:$0xff]
        %v211 = vld [vmem:[%s185 + $0x88] sm:$0xff]
        %v212 = vld [vmem:[%s185 + $0x90] sm:$0xff]
        %v213 = vld [vmem:[%s185 + $0x98] sm:$0xff]
        %v214 = vld [vmem:[%s185 + $0xa0] sm:$0xff]
        %v215 = vld [vmem:[%s185 + $0xa8] sm:$0xff]
        %v216 = vld [vmem:[%s185 + $0xb0] sm:$0xff]
        %v217 = vld [vmem:[%s185 + $0xb8] sm:$0xff]
        %v218 = vld [vmem:[%s185 + $0xc0] sm:$0xff]
        %v219 = vld [vmem:[%s185 + $0xc8] sm:$0xff]
        %v220 = vld [vmem:[%s185 + $0xd0] sm:$0xff]
        %v221 = vld [vmem:[%s185 + $0xd8] sm:$0xff]
        %v222 = vld [vmem:[%s185 + $0xe0] sm:$0xff]
        %v223 = vld [vmem:[%s185 + $0xe8] sm:$0xff]
        %v224 = vld [vmem:[%s185 + $0xf0] sm:$0xff]
        %v225 = vld [vmem:[%s185 + $0xf8] sm:$0xff]
        %v226 = vld [vmem:[%s185 + $0x100] sm:$0xff]
        %v227 = vld [vmem:[%s185 + $0x108] sm:$0xff]
        %v228 = vld [vmem:[%s185 + $0x110] sm:$0xff]
        %v229 = vld [vmem:[%s185 + $0x118] sm:$0xff]
        %v230 = vlaneseq
        %v231 = vand.u32 %v230, 127
        %232 = vset.pattern.permute.xlu0 0
        %233 = vperm.xlu0 %232, %v194
        %v234 = vpop.permute.xlu0 %233
        %235 = vset.pattern.permute.xlu0 0
        %236 = vperm.xlu0 %235, %v195
        %v237 = vpop.permute.xlu0 %236
        %238 = vset.pattern.permute.xlu0 0
        %239 = vperm.xlu0 %238, %v196
        %v240 = vpop.permute.xlu0 %239
        %241 = vset.pattern.permute.xlu0 0
        %242 = vperm.xlu0 %241, %v197
        %v243 = vpop.permute.xlu0 %242
        %244 = vset.pattern.permute.xlu0 0
        %245 = vperm.xlu0 %244, %v198
        %v246 = vpop.permute.xlu0 %245
        %247 = vset.pattern.permute.xlu0 0
        %248 = vperm.xlu0 %247, %v199
        %v249 = vpop.permute.xlu0 %248
        %250 = vset.pattern.permute.xlu0 0
        %251 = vperm.xlu0 %250, %v200
        %v252 = vpop.permute.xlu0 %251
        %253 = vset.pattern.permute.xlu0 0
        %254 = vperm.xlu0 %253, %v201
        %v255 = vpop.permute.xlu0 %254
        %256 = vset.pattern.permute.xlu0 0
        %257 = vperm.xlu0 %256, %v202
        %v258 = vpop.permute.xlu0 %257
        %259 = vset.pattern.permute.xlu0 0
        %260 = vperm.xlu0 %259, %v203
        %v261 = vpop.permute.xlu0 %260
        %262 = vset.pattern.permute.xlu0 0
        %263 = vperm.xlu0 %262, %v204
        %v264 = vpop.permute.xlu0 %263
        %265 = vset.pattern.permute.xlu0 0
        %266 = vperm.xlu0 %265, %v205
        %v267 = vpop.permute.xlu0 %266
        %268 = vset.pattern.permute.xlu0 0
        %269 = vperm.xlu0 %268, %v206
        %v270 = vpop.permute.xlu0 %269
        %271 = vset.pattern.permute.xlu0 0
        %272 = vperm.xlu0 %271, %v207
        %v273 = vpop.permute.xlu0 %272
        %274 = vset.pattern.permute.xlu0 0
        %275 = vperm.xlu0 %274, %v208
        %v276 = vpop.permute.xlu0 %275
        %277 = vset.pattern.permute.xlu0 0
        %278 = vperm.xlu0 %277, %v209
        %v279 = vpop.permute.xlu0 %278
        %280 = vset.pattern.permute.xlu0 0
        %281 = vperm.xlu0 %280, %v210
        %v282 = vpop.permute.xlu0 %281
        %283 = vset.pattern.permute.xlu0 0
        %284 = vperm.xlu0 %283, %v211
        %v285 = vpop.permute.xlu0 %284
        %286 = vset.pattern.permute.xlu0 0
        %287 = vperm.xlu0 %286, %v212
        %v288 = vpop.permute.xlu0 %287
        %289 = vset.pattern.permute.xlu0 0
        %290 = vperm.xlu0 %289, %v213
        %v291 = vpop.permute.xlu0 %290
        %292 = vset.pattern.permute.xlu0 0
        %293 = vperm.xlu0 %292, %v214
        %v294 = vpop.permute.xlu0 %293
        %295 = vset.pattern.permute.xlu0 0
        %296 = vperm.xlu0 %295, %v215
        %v297 = vpop.permute.xlu0 %296
        %298 = vset.pattern.permute.xlu0 0
        %299 = vperm.xlu0 %298, %v216
        %v300 = vpop.permute.xlu0 %299
        %301 = vset.pattern.permute.xlu0 0
        %302 = vperm.xlu0 %301, %v217
        %v303 = vpop.permute.xlu0 %302
        %304 = vset.pattern.permute.xlu0 0
        %305 = vperm.xlu0 %304, %v218
        %v306 = vpop.permute.xlu0 %305
        %307 = vset.pattern.permute.xlu0 0
        %308 = vperm.xlu0 %307, %v219
        %v309 = vpop.permute.xlu0 %308
        %310 = vset.pattern.permute.xlu0 0
        %311 = vperm.xlu0 %310, %v220
        %v312 = vpop.permute.xlu0 %311
        %313 = vset.pattern.permute.xlu0 0
        %314 = vperm.xlu0 %313, %v221
        %v315 = vpop.permute.xlu0 %314
        %316 = vset.pattern.permute.xlu0 0
        %317 = vperm.xlu0 %316, %v222
        %v318 = vpop.permute.xlu0 %317
        %319 = vset.pattern.permute.xlu0 0
        %320 = vperm.xlu0 %319, %v223
        %v321 = vpop.permute.xlu0 %320
        %322 = vset.pattern.permute.xlu0 0
        %323 = vperm.xlu0 %322, %v224
        %v324 = vpop.permute.xlu0 %323
        %325 = vset.pattern.permute.xlu0 0
        %326 = vperm.xlu0 %325, %v225
        %v327 = vpop.permute.xlu0 %326
        %328 = vset.pattern.permute.xlu0 0
        %329 = vperm.xlu0 %328, %v226
        %v330 = vpop.permute.xlu0 %329
        %331 = vset.pattern.permute.xlu0 0
        %332 = vperm.xlu0 %331, %v227
        %v333 = vpop.permute.xlu0 %332
        %334 = vset.pattern.permute.xlu0 0
        %335 = vperm.xlu0 %334, %v228
        %v336 = vpop.permute.xlu0 %335
        %337 = vset.pattern.permute.xlu0 0
        %338 = vperm.xlu0 %337, %v229
        %v339 = vpop.permute.xlu0 %338
        %vm340 = vcmp.eq.s32.totalorder %v231, %v234
        %vm341 = vcmp.eq.s32.totalorder %v231, %v237
        %vm342 = vcmp.eq.s32.totalorder %v231, %v240
        %vm343 = vcmp.eq.s32.totalorder %v231, %v243
        %vm344 = vcmp.eq.s32.totalorder %v231, %v246
        %vm345 = vcmp.eq.s32.totalorder %v231, %v249
        %vm346 = vcmp.eq.s32.totalorder %v231, %v252
        %vm347 = vcmp.eq.s32.totalorder %v231, %v255
        %vm348 = vcmp.eq.s32.totalorder %v231, %v258
        %vm349 = vcmp.eq.s32.totalorder %v231, %v261
        %vm350 = vcmp.eq.s32.totalorder %v231, %v264
        %vm351 = vcmp.eq.s32.totalorder %v231, %v267
        %vm352 = vcmp.eq.s32.totalorder %v231, %v270
        %vm353 = vcmp.eq.s32.totalorder %v231, %v273
        %vm354 = vcmp.eq.s32.totalorder %v231, %v276
        %vm355 = vcmp.eq.s32.totalorder %v231, %v279
        %vm356 = vcmp.eq.s32.totalorder %v231, %v282
        %vm357 = vcmp.eq.s32.totalorder %v231, %v285
        %vm358 = vcmp.eq.s32.totalorder %v231, %v288
        %vm359 = vcmp.eq.s32.totalorder %v231, %v291
        %vm360 = vcmp.eq.s32.totalorder %v231, %v294
        %vm361 = vcmp.eq.s32.totalorder %v231, %v297
        %vm362 = vcmp.eq.s32.totalorder %v231, %v300
        %vm363 = vcmp.eq.s32.totalorder %v231, %v303
        %vm364 = vcmp.eq.s32.totalorder %v231, %v306
        %vm365 = vcmp.eq.s32.totalorder %v231, %v309
        %vm366 = vcmp.eq.s32.totalorder %v231, %v312
        %vm367 = vcmp.eq.s32.totalorder %v231, %v315
        %vm368 = vcmp.eq.s32.totalorder %v231, %v318
        %vm369 = vcmp.eq.s32.totalorder %v231, %v321
        %vm370 = vcmp.eq.s32.totalorder %v231, %v324
        %vm371 = vcmp.eq.s32.totalorder %v231, %v327
        %vm372 = vcmp.eq.s32.totalorder %v231, %v330
        %vm373 = vcmp.eq.s32.totalorder %v231, %v333
        %vm374 = vcmp.eq.s32.totalorder %v231, %v336
        %vm375 = vcmp.eq.s32.totalorder %v231, %v339
        %v376 = vsel %vm340, 1, 0
        %v377 = vsel %vm341, 1, 0
        %v378 = vsel %vm342, 1, 0
        %v379 = vsel %vm343, 1, 0
        %v380 = vsel %vm344, 1, 0
        %v381 = vsel %vm345, 1, 0
        %v382 = vsel %vm346, 1, 0
        %v383 = vsel %vm347, 1, 0
        %v384 = vsel %vm348, 1, 0
        %v385 = vsel %vm349, 1, 0
        %v386 = vsel %vm350, 1, 0
        %v387 = vsel %vm351, 1, 0
        %v388 = vsel %vm352, 1, 0
        %v389 = vsel %vm353, 1, 0
        %v390 = vsel %vm354, 1, 0
        %v391 = vsel %vm355, 1, 0
        %v392 = vsel %vm356, 1, 0
        %v393 = vsel %vm357, 1, 0
        %v394 = vsel %vm358, 1, 0
        %v395 = vsel %vm359, 1, 0
        %v396 = vsel %vm360, 1, 0
        %v397 = vsel %vm361, 1, 0
        %v398 = vsel %vm362, 1, 0
        %v399 = vsel %vm363, 1, 0
        %v400 = vsel %vm364, 1, 0
        %v401 = vsel %vm365, 1, 0
        %v402 = vsel %vm366, 1, 0
        %v403 = vsel %vm367, 1, 0
        %v404 = vsel %vm368, 1, 0
        %v405 = vsel %vm369, 1, 0
        %v406 = vsel %vm370, 1, 0
        %v407 = vsel %vm371, 1, 0
        %v408 = vsel %vm372, 1, 0
        %v409 = vsel %vm373, 1, 0
        %v410 = vsel %vm374, 1, 0
        %v411 = vsel %vm375, 1, 0
        %v412 = vcvt.s32.f32 %v376
        %v413 = vcvt.s32.f32 %v377
        %v414 = vcvt.s32.f32 %v378
        %v415 = vcvt.s32.f32 %v379
        %v416 = vcvt.s32.f32 %v380
        %v417 = vcvt.s32.f32 %v381
        %v418 = vcvt.s32.f32 %v382
        %v419 = vcvt.s32.f32 %v383
        %v420 = vcvt.s32.f32 %v384
        %v421 = vcvt.s32.f32 %v385
        %v422 = vcvt.s32.f32 %v386
        %v423 = vcvt.s32.f32 %v387
        %v424 = vcvt.s32.f32 %v388
        %v425 = vcvt.s32.f32 %v389
        %v426 = vcvt.s32.f32 %v390
        %v427 = vcvt.s32.f32 %v391
        %v428 = vcvt.s32.f32 %v392
        %v429 = vcvt.s32.f32 %v393
        %v430 = vcvt.s32.f32 %v394
        %v431 = vcvt.s32.f32 %v395
        %v432 = vcvt.s32.f32 %v396
        %v433 = vcvt.s32.f32 %v397
        %v434 = vcvt.s32.f32 %v398
        %v435 = vcvt.s32.f32 %v399
        %v436 = vcvt.s32.f32 %v400
        %v437 = vcvt.s32.f32 %v401
        %v438 = vcvt.s32.f32 %v402
        %v439 = vcvt.s32.f32 %v403
        %v440 = vcvt.s32.f32 %v404
        %v441 = vcvt.s32.f32 %v405
        %v442 = vcvt.s32.f32 %v406
        %v443 = vcvt.s32.f32 %v407
        %v444 = vcvt.s32.f32 %v408
        %v445 = vcvt.s32.f32 %v409
        %v446 = vcvt.s32.f32 %v410
        %v447 = vcvt.s32.f32 %v411
        %v448 = vld [vmem:[%s1] sm:$0xff]
        %v449 = vld [vmem:[%s1 + $0x8] sm:$0xff]
        %v450 = vld [vmem:[%s1 + $0x10] sm:$0xff]
        %v451 = vld [vmem:[%s1 + $0x18] sm:$0xff]
        %v452 = vld [vmem:[%s1 + $0x20] sm:$0xff]
        %v453 = vld [vmem:[%s1 + $0x28] sm:$0xff]
        %v454 = vld [vmem:[%s1 + $0x30] sm:$0xff]
        %v455 = vld [vmem:[%s1 + $0x38] sm:$0xff]
        %v456 = vld [vmem:[%s1 + $0x40] sm:$0xff]
        %v457 = vld [vmem:[%s1 + $0x48] sm:$0xff]
        %v458 = vld [vmem:[%s1 + $0x50] sm:$0x1]
        %vm459 = vcmask 662528
        %v461 = vsel %vm459, %v412, 0
        %v464 = vsel %vm459, %v413, 0
        %v467 = vsel %vm459, %v414, 0
        %v470 = vsel %vm459, %v415, 0
        %v473 = vsel %vm459, %v416, 0
        %v476 = vsel %vm459, %v417, 0
        %v479 = vsel %vm459, %v418, 0
        %v482 = vsel %vm459, %v419, 0
        %v485 = vsel %vm459, %v420, 0
        %v488 = vsel %vm459, %v421, 0
        %v491 = vsel %vm459, %v422, 0
        %v494 = vsel %vm459, %v423, 0
        %v497 = vsel %vm459, %v424, 0
        %v500 = vsel %vm459, %v425, 0
        %v503 = vsel %vm459, %v426, 0
        %v506 = vsel %vm459, %v427, 0
        %v509 = vsel %vm459, %v428, 0
        %v512 = vsel %vm459, %v429, 0
        %v515 = vsel %vm459, %v430, 0
        %v518 = vsel %vm459, %v431, 0
        %v521 = vsel %vm459, %v432, 0
        %v524 = vsel %vm459, %v433, 0
        %v527 = vsel %vm459, %v434, 0
        %v530 = vsel %vm459, %v435, 0
        %v533 = vsel %vm459, %v436, 0
        %v536 = vsel %vm459, %v437, 0
        %v539 = vsel %vm459, %v438, 0
        %v542 = vsel %vm459, %v439, 0
        %v545 = vsel %vm459, %v440, 0
        %v548 = vsel %vm459, %v441, 0
        %v551 = vsel %vm459, %v442, 0
        %v554 = vsel %vm459, %v443, 0
        %v557 = vsel %vm459, %v444, 0
        %v560 = vsel %vm459, %v445, 0
        %v563 = vsel %vm459, %v446, 0
        %v566 = vsel %vm459, %v447, 0
        %vm568 = vcmask 1040384
        %v570 = vsel %vm568, %v458, 0
        %572 = vmatprep.subr.mxu0 0.0
        %v573 = vand.u32 %v448, 4294901760
        %574 = vmatpush1.msra.mxu0 %v573
        %575 = vmatprep.subr.mxu0 0.0
        %v576 = vand.u32 %v449, 4294901760
        %577 = vmatpush1.msra.mxu0 %v576
        %578 = vmatprep.subr.mxu0 0.0
        %v579 = vand.u32 %v450, 4294901760
        %580 = vmatpush1.msra.mxu0 %v579
        %581 = vmatprep.subr.mxu0 0.0
        %v582 = vand.u32 %v451, 4294901760
        %583 = vmatpush1.msra.mxu0 %v582
        %584 = vmatprep.subr.mxu0 0.0
        %v585 = vand.u32 %v452, 4294901760
        %586 = vmatpush1.msra.mxu0 %v585
        %587 = vmatprep.subr.mxu0 0.0
        %v588 = vand.u32 %v453, 4294901760
        %589 = vmatpush1.msra.mxu0 %v588
        %590 = vmatprep.subr.mxu0 0.0
        %v591 = vand.u32 %v454, 4294901760
        %592 = vmatpush1.msra.mxu0 %v591
        %593 = vmatprep.subr.mxu0 0.0
        %v594 = vand.u32 %v455, 4294901760
        %595 = vmatpush1.msra.mxu0 %v594
        %596 = vmatprep.subr.mxu0 0.0
        %v597 = vand.u32 %v456, 4294901760
        %598 = vmatpush1.msra.mxu0 %v597
        %599 = vmatprep.subr.mxu0 0.0
        %v600 = vand.u32 %v457, 4294901760
        %601 = vmatpush1.msra.mxu0 %v600
        %602 = vmatprep.subr.mxu0 0.0
        %v603 = vand.u32 %v570, 4294901760
        %604 = vmatpush1.msra.mxu0 %v603
        %605 = vmatprep.subr.mxu0 0.0
        %606 = vmatpush1.msra.mxu0 0.0
        %607 = vmatprep.subr.mxu0 0.0
        %608 = vmatpush1.msra.mxu0 0.0
        %609 = vmatprep.subr.mxu0 0.0
        %610 = vmatpush1.msra.mxu0 0.0
        %611 = vmatprep.subr.mxu0 0.0
        %612 = vmatpush1.msra.mxu0 0.0
        %613 = vmatprep.subr.mxu0 0.0
        %614 = vmatpush1.msra.mxu0 0.0
        %615 = vmatprep.subr.mxu0 0.0
        %616 = vmatpush1.msra.mxu0 0.0
        %617 = vmatprep.subr.mxu0 0.0
        %618 = vmatpush1.msra.mxu0 0.0
        %619 = vmatprep.subr.mxu0 0.0
        %620 = vmatpush1.msra.mxu0 0.0
        %621 = vmatprep.subr.mxu0 0.0
        %622 = vmatpush1.msra.mxu0 0.0
        %623 = vmatprep.subr.mxu0 0.0
        %624 = vmatpush1.msra.mxu0 0.0
        %625 = vmatprep.subr.mxu0 0.0
        %626 = vmatpush1.msra.mxu0 0.0
        %627 = vmatprep.subr.mxu0 0.0
        %628 = vmatpush1.msra.mxu0 0.0
        %629 = vmatprep.subr.mxu0 0.0
        %630 = vmatpush1.msra.mxu0 0.0
        %631 = vmatprep.subr.mxu0 0.0
        %632 = vmatpush1.msra.mxu0 0.0
        %633 = vmatprep.subr.mxu0 0.0
        %634 = vmatpush1.msra.mxu0 0.0
        %635 = vmatprep.subr.mxu0 0.0
        %636 = vmatpush1.msra.mxu0 0.0
        %637 = vmatprep.subr.mxu0 0.0
        %638 = vmatpush1.msra.mxu0 0.0
        %639 = vmatprep.subr.mxu0 0.0
        %640 = vmatpush1.msra.mxu0 0.0
        %641 = vmatprep.subr.mxu0 0.0
        %642 = vmatpush1.msra.mxu0 0.0
        %643 = vmatprep.subr.mxu0 0.0
        %644 = vmatpush1.msra.mxu0 0.0
        %645 = vmatprep.subr.mxu0 0.0
        %646 = vmatpush1.msra.mxu0 0.0
        %647 = vmatprep.mubr.f32.mxu0 0.0
        %v648 = vand.u32 %v461, 4294901760
        %v649 = vsub.f32 %v461, %v648
        %v650 = vand.u32 %v649, 4294901760
        %v651 = vsub.f32 %v649, %v650
        %v652 = vand.u32 %v651, 4294901760
        %653 = vmatmul.mubr.f32.gmra.mrb[0].mxu0 %v652
        %v654 = vpop.f32.mrb[0].mxu0
        %v655 = vadd.f32 0.0, %v654
        %v656 = vpop.f32.mrb[0].mxu0
        %657 = vmatprep.mubr.f32.mxu0 0.0
        %v658 = vand.u32 %v464, 4294901760
        %v659 = vsub.f32 %v464, %v658
        %v660 = vand.u32 %v659, 4294901760
        %v661 = vsub.f32 %v659, %v660
        %v662 = vand.u32 %v661, 4294901760
        %663 = vmatmul.mubr.f32.gmra.mrb[0].mxu0 %v662
        %v664 = vpop.f32.mrb[0].mxu0
        %v665 = vadd.f32 0.0, %v664
        %v666 = vpop.f32.mrb[0].mxu0
        %667 = vmatprep.mubr.f32.mxu0 0.0
        %v668 = vand.u32 %v467, 4294901760
        %v669 = vsub.f32 %v467, %v668
        %v670 = vand.u32 %v669, 4294901760
        %v671 = vsub.f32 %v669, %v670
        %v672 = vand.u32 %v671, 4294901760
        %673 = vmatmul.mubr.f32.gmra.mrb[0].mxu0 %v672
        %v674 = vpop.f32.mrb[0].mxu0
        %v675 = vadd.f32 0.0, %v674
        %v676 = vpop.f32.mrb[0].mxu0
        %677 = vmatprep.mubr.f32.mxu0 0.0
        %v678 = vand.u32 %v470, 4294901760
        %v679 = vsub.f32 %v470, %v678
        %v680 = vand.u32 %v679, 4294901760
        %v681 = vsub.f32 %v679, %v680
        %v682 = vand.u32 %v681, 4294901760
        %683 = vmatmul.mubr.f32.gmra.mrb[0].mxu0 %v682
        %v684 = vpop.f32.mrb[0].mxu0
        %v685 = vadd.f32 0.0, %v684
        %v686 = vpop.f32.mrb[0].mxu0
        %687 = vmatprep.mubr.f32.mxu0 0.0
        %v688 = vand.u32 %v473, 4294901760
        %v689 = vsub.f32 %v473, %v688
        %v690 = vand.u32 %v689, 4294901760
        %v691 = vsub.f32 %v689, %v690
        %v692 = vand.u32 %v691, 4294901760
        %693 = vmatmul.mubr.f32.gmra.mrb[0].mxu0 %v692
        %v694 = vpop.f32.mrb[0].mxu0
        %v695 = vadd.f32 0.0, %v694
        %v696 = vpop.f32.mrb[0].mxu0
        %697 = vmatprep.mubr.f32.mxu0 0.0
        %v698 = vand.u32 %v476, 4294901760
        %v699 = vsub.f32 %v476, %v698
        %v700 = vand.u32 %v699, 4294901760
        %v701 = vsub.f32 %v699, %v700
        %v702 = vand.u32 %v701, 4294901760
        %703 = vmatmul.mubr.f32.gmra.mrb[0].mxu0 %v702
        %v704 = vpop.f32.mrb[0].mxu0
        %v705 = vadd.f32 0.0, %v704
        %v706 = vpop.f32.mrb[0].mxu0
        %707 = vmatprep.mubr.f32.mxu0 0.0
        %v708 = vand.u32 %v479, 4294901760
        %v709 = vsub.f32 %v479, %v708
        %v710 = vand.u32 %v709, 4294901760
        %v711 = vsub.f32 %v709, %v710
        %v712 = vand.u32 %v711, 4294901760
        %713 = vmatmul.mubr.f32.gmra.mrb[0].mxu0 %v712
        %v714 = vpop.f32.mrb[0].mxu0
        %v715 = vadd.f32 0.0, %v714
        %v716 = vpop.f32.mrb[0].mxu0
        %717 = vmatprep.mubr.f32.mxu0 0.0
        %v718 = vand.u32 %v482, 4294901760
        %v719 = vsub.f32 %v482, %v718
        %v720 = vand.u32 %v719, 4294901760
        %v721 = vsub.f32 %v719, %v720
        %v722 = vand.u32 %v721, 4294901760
        %723 = vmatmul.mubr.f32.gmra.mrb[0].mxu0 %v722
        %v724 = vpop.f32.mrb[0].mxu0
        %v725 = vadd.f32 0.0, %v724
        %v726 = vpop.f32.mrb[0].mxu0
        %727 = vmatprep.mubr.f32.mxu0 0.0
        %v728 = vand.u32 %v485, 4294901760
        %v729 = vsub.f32 %v485, %v728
        %v730 = vand.u32 %v729, 4294901760
        %v731 = vsub.f32 %v729, %v730
        %v732 = vand.u32 %v731, 4294901760
        %733 = vmatmul.mubr.f32.gmra.mrb[0].mxu0 %v732
        %v734 = vpop.f32.mrb[0].mxu0
        %v735 = vadd.f32 0.0, %v734
        %v736 = vpop.f32.mrb[0].mxu0
        %737 = vmatprep.mubr.f32.mxu0 0.0
        %v738 = vand.u32 %v488, 4294901760
        %v739 = vsub.f32 %v488, %v738
        %v740 = vand.u32 %v739, 4294901760
        %v741 = vsub.f32 %v739, %v740
        %v742 = vand.u32 %v741, 4294901760
        %743 = vmatmul.mubr.f32.gmra.mrb[0].mxu0 %v742
        %v744 = vpop.f32.mrb[0].mxu0
        %v745 = vadd.f32 0.0, %v744
        %v746 = vpop.f32.mrb[0].mxu0
        %747 = vmatprep.mubr.f32.mxu0 0.0
        %v748 = vand.u32 %v491, 4294901760
        %v749 = vsub.f32 %v491, %v748
        %v750 = vand.u32 %v749, 4294901760
        %v751 = vsub.f32 %v749, %v750
        %v752 = vand.u32 %v751, 4294901760
        %753 = vmatmul.mubr.f32.gmra.mrb[0].mxu0 %v752
        %v754 = vpop.f32.mrb[0].mxu0
        %v755 = vadd.f32 0.0, %v754
        %v756 = vpop.f32.mrb[0].mxu0
        %757 = vmatprep.mubr.f32.mxu0 0.0
        %v758 = vand.u32 %v494, 4294901760
        %v759 = vsub.f32 %v494, %v758
        %v760 = vand.u32 %v759, 4294901760
        %v761 = vsub.f32 %v759, %v760
        %v762 = vand.u32 %v761, 4294901760
        %763 = vmatmul.mubr.f32.gmra.mrb[0].mxu0 %v762
        %v764 = vpop.f32.mrb[0].mxu0
        %v765 = vadd.f32 0.0, %v764
        %v766 = vpop.f32.mrb[0].mxu0
        %767 = vmatprep.mubr.f32.mxu0 0.0
        %v768 = vand.u32 %v497, 4294901760
        %v769 = vsub.f32 %v497, %v768
        %v770 = vand.u32 %v769, 4294901760
        %v771 = vsub.f32 %v769, %v770
        %v772 = vand.u32 %v771, 4294901760
        %773 = vmatmul.mubr.f32.gmra.mrb[0].mxu0 %v772
        %v774 = vpop.f32.mrb[0].mxu0
        %v775 = vadd.f32 0.0, %v774
        %v776 = vpop.f32.mrb[0].mxu0
        %777 = vmatprep.mubr.f32.mxu0 0.0
        %v778 = vand.u32 %v500, 4294901760
        %v779 = vsub.f32 %v500, %v778
        %v780 = vand.u32 %v779, 4294901760
        %v781 = vsub.f32 %v779, %v780
        %v782 = vand.u32 %v781, 4294901760
        %783 = vmatmul.mubr.f32.gmra.mrb[0].mxu0 %v782
        %v784 = vpop.f32.mrb[0].mxu0
        %v785 = vadd.f32 0.0, %v784
        %v786 = vpop.f32.mrb[0].mxu0
        %787 = vmatprep.mubr.f32.mxu0 0.0
        %v788 = vand.u32 %v503, 4294901760
        %v789 = vsub.f32 %v503, %v788
        %v790 = vand.u32 %v789, 4294901760
        %v791 = vsub.f32 %v789, %v790
        %v792 = vand.u32 %v791, 4294901760
        %793 = vmatmul.mubr.f32.gmra.mrb[0].mxu0 %v792
        %v794 = vpop.f32.mrb[0].mxu0
        %v795 = vadd.f32 0.0, %v794
        %v796 = vpop.f32.mrb[0].mxu0
        %797 = vmatprep.mubr.f32.mxu0 0.0
        %v798 = vand.u32 %v506, 4294901760
        %v799 = vsub.f32 %v506, %v798
        %v800 = vand.u32 %v799, 4294901760
        %v801 = vsub.f32 %v799, %v800
        %v802 = vand.u32 %v801, 4294901760
        %803 = vmatmul.mubr.f32.gmra.mrb[0].mxu0 %v802
        %v804 = vpop.f32.mrb[0].mxu0
        %v805 = vadd.f32 0.0, %v804
        %v806 = vpop.f32.mrb[0].mxu0
        %807 = vmatprep.mubr.f32.mxu0 0.0
        %v808 = vand.u32 %v509, 4294901760
        %v809 = vsub.f32 %v509, %v808
        %v810 = vand.u32 %v809, 4294901760
        %v811 = vsub.f32 %v809, %v810
        %v812 = vand.u32 %v811, 4294901760
        %813 = vmatmul.mubr.f32.gmra.mrb[0].mxu0 %v812
        %v814 = vpop.f32.mrb[0].mxu0
        %v815 = vadd.f32 0.0, %v814
        %v816 = vpop.f32.mrb[0].mxu0
        %817 = vmatprep.mubr.f32.mxu0 0.0
        %v818 = vand.u32 %v512, 4294901760
        %v819 = vsub.f32 %v512, %v818
        %v820 = vand.u32 %v819, 4294901760
        %v821 = vsub.f32 %v819, %v820
        %v822 = vand.u32 %v821, 4294901760
        %823 = vmatmul.mubr.f32.gmra.mrb[0].mxu0 %v822
        %v824 = vpop.f32.mrb[0].mxu0
        %v825 = vadd.f32 0.0, %v824
        %v826 = vpop.f32.mrb[0].mxu0
        %827 = vmatprep.mubr.f32.mxu0 0.0
        %v828 = vand.u32 %v515, 4294901760
        %v829 = vsub.f32 %v515, %v828
        %v830 = vand.u32 %v829, 4294901760
        %v831 = vsub.f32 %v829, %v830
        %v832 = vand.u32 %v831, 4294901760
        %833 = vmatmul.mubr.f32.gmra.mrb[0].mxu0 %v832
        %v834 = vpop.f32.mrb[0].mxu0
        %v835 = vadd.f32 0.0, %v834
        %v836 = vpop.f32.mrb[0].mxu0
        %837 = vmatprep.mubr.f32.mxu0 0.0
        %v838 = vand.u32 %v518, 4294901760
        %v839 = vsub.f32 %v518, %v838
        %v840 = vand.u32 %v839, 4294901760
        %v841 = vsub.f32 %v839, %v840
        %v842 = vand.u32 %v841, 4294901760
        %843 = vmatmul.mubr.f32.gmra.mrb[0].mxu0 %v842
        %v844 = vpop.f32.mrb[0].mxu0
        %v845 = vadd.f32 0.0, %v844
        %v846 = vpop.f32.mrb[0].mxu0
        %847 = vmatprep.mubr.f32.mxu0 0.0
        %v848 = vand.u32 %v521, 4294901760
        %v849 = vsub.f32 %v521, %v848
        %v850 = vand.u32 %v849, 4294901760
        %v851 = vsub.f32 %v849, %v850
        %v852 = vand.u32 %v851, 4294901760
        %853 = vmatmul.mubr.f32.gmra.mrb[0].mxu0 %v852
        %v854 = vpop.f32.mrb[0].mxu0
        %v855 = vadd.f32 0.0, %v854
        %v856 = vpop.f32.mrb[0].mxu0
        %857 = vmatprep.mubr.f32.mxu0 0.0
        %v858 = vand.u32 %v524, 4294901760
        %v859 = vsub.f32 %v524, %v858
        %v860 = vand.u32 %v859, 4294901760
        %v861 = vsub.f32 %v859, %v860
        %v862 = vand.u32 %v861, 4294901760
        %863 = vmatmul.mubr.f32.gmra.mrb[0].mxu0 %v862
        %v864 = vpop.f32.mrb[0].mxu0
        %v865 = vadd.f32 0.0, %v864
        %v866 = vpop.f32.mrb[0].mxu0
        %867 = vmatprep.mubr.f32.mxu0 0.0
        %v868 = vand.u32 %v527, 4294901760
        %v869 = vsub.f32 %v527, %v868
        %v870 = vand.u32 %v869, 4294901760
        %v871 = vsub.f32 %v869, %v870
        %v872 = vand.u32 %v871, 4294901760
        %873 = vmatmul.mubr.f32.gmra.mrb[0].mxu0 %v872
        %v874 = vpop.f32.mrb[0].mxu0
        %v875 = vadd.f32 0.0, %v874
        %v876 = vpop.f32.mrb[0].mxu0
        %877 = vmatprep.mubr.f32.mxu0 0.0
        %v878 = vand.u32 %v530, 4294901760
        %v879 = vsub.f32 %v530, %v878
        %v880 = vand.u32 %v879, 4294901760
        %v881 = vsub.f32 %v879, %v880
        %v882 = vand.u32 %v881, 4294901760
        %883 = vmatmul.mubr.f32.gmra.mrb[0].mxu0 %v882
        %v884 = vpop.f32.mrb[0].mxu0
        %v885 = vadd.f32 0.0, %v884
        %v886 = vpop.f32.mrb[0].mxu0
        %887 = vmatprep.mubr.f32.mxu0 0.0
        %v888 = vand.u32 %v533, 4294901760
        %v889 = vsub.f32 %v533, %v888
        %v890 = vand.u32 %v889, 4294901760
        %v891 = vsub.f32 %v889, %v890
        %v892 = vand.u32 %v891, 4294901760
        %893 = vmatmul.mubr.f32.gmra.mrb[0].mxu0 %v892
        %v894 = vpop.f32.mrb[0].mxu0
        %v895 = vadd.f32 0.0, %v894
        %v896 = vpop.f32.mrb[0].mxu0
        %897 = vmatprep.mubr.f32.mxu0 0.0
        %v898 = vand.u32 %v536, 4294901760
        %v899 = vsub.f32 %v536, %v898
        %v900 = vand.u32 %v899, 4294901760
        %v901 = vsub.f32 %v899, %v900
        %v902 = vand.u32 %v901, 4294901760
        %903 = vmatmul.mubr.f32.gmra.mrb[0].mxu0 %v902
        %v904 = vpop.f32.mrb[0].mxu0
        %v905 = vadd.f32 0.0, %v904
        %v906 = vpop.f32.mrb[0].mxu0
        %907 = vmatprep.mubr.f32.mxu0 0.0
        %v908 = vand.u32 %v539, 4294901760
        %v909 = vsub.f32 %v539, %v908
        %v910 = vand.u32 %v909, 4294901760
        %v911 = vsub.f32 %v909, %v910
        %v912 = vand.u32 %v911, 4294901760
        %913 = vmatmul.mubr.f32.gmra.mrb[0].mxu0 %v912
        %v914 = vpop.f32.mrb[0].mxu0
        %v915 = vadd.f32 0.0, %v914
        %v916 = vpop.f32.mrb[0].mxu0
        %917 = vmatprep.mubr.f32.mxu0 0.0
        %v918 = vand.u32 %v542, 4294901760
        %v919 = vsub.f32 %v542, %v918
        %v920 = vand.u32 %v919, 4294901760
        %v921 = vsub.f32 %v919, %v920
        %v922 = vand.u32 %v921, 4294901760
        %923 = vmatmul.mubr.f32.gmra.mrb[0].mxu0 %v922
        %v924 = vpop.f32.mrb[0].mxu0
        %v925 = vadd.f32 0.0, %v924
        %v926 = vpop.f32.mrb[0].mxu0
        %927 = vmatprep.mubr.f32.mxu0 0.0
        %v928 = vand.u32 %v545, 4294901760
        %v929 = vsub.f32 %v545, %v928
        %v930 = vand.u32 %v929, 4294901760
        %v931 = vsub.f32 %v929, %v930
        %v932 = vand.u32 %v931, 4294901760
        %933 = vmatmul.mubr.f32.gmra.mrb[0].mxu0 %v932
        %v934 = vpop.f32.mrb[0].mxu0
        %v935 = vadd.f32 0.0, %v934
        %v936 = vpop.f32.mrb[0].mxu0
        %937 = vmatprep.mubr.f32.mxu0 0.0
        %v938 = vand.u32 %v548, 4294901760
        %v939 = vsub.f32 %v548, %v938
        %v940 = vand.u32 %v939, 4294901760
        %v941 = vsub.f32 %v939, %v940
        %v942 = vand.u32 %v941, 4294901760
        %943 = vmatmul.mubr.f32.gmra.mrb[0].mxu0 %v942
        %v944 = vpop.f32.mrb[0].mxu0
        %v945 = vadd.f32 0.0, %v944
        %v946 = vpop.f32.mrb[0].mxu0
        %947 = vmatprep.mubr.f32.mxu0 0.0
        %v948 = vand.u32 %v551, 4294901760
        %v949 = vsub.f32 %v551, %v948
        %v950 = vand.u32 %v949, 4294901760
        %v951 = vsub.f32 %v949, %v950
        %v952 = vand.u32 %v951, 4294901760
        %953 = vmatmul.mubr.f32.gmra.mrb[0].mxu0 %v952
        %v954 = vpop.f32.mrb[0].mxu0
        %v955 = vadd.f32 0.0, %v954
        %v956 = vpop.f32.mrb[0].mxu0
        %957 = vmatprep.mubr.f32.mxu0 0.0
        %v958 = vand.u32 %v554, 4294901760
        %v959 = vsub.f32 %v554, %v958
        %v960 = vand.u32 %v959, 4294901760
        %v961 = vsub.f32 %v959, %v960
        %v962 = vand.u32 %v961, 4294901760
        %963 = vmatmul.mubr.f32.gmra.mrb[0].mxu0 %v962
        %v964 = vpop.f32.mrb[0].mxu0
        %v965 = vadd.f32 0.0, %v964
        %v966 = vpop.f32.mrb[0].mxu0
        %967 = vmatprep.mubr.f32.mxu0 0.0
        %v968 = vand.u32 %v557, 4294901760
        %v969 = vsub.f32 %v557, %v968
        %v970 = vand.u32 %v969, 4294901760
        %v971 = vsub.f32 %v969, %v970
        %v972 = vand.u32 %v971, 4294901760
        %973 = vmatmul.mubr.f32.gmra.mrb[0].mxu0 %v972
        %v974 = vpop.f32.mrb[0].mxu0
        %v975 = vadd.f32 0.0, %v974
        %v976 = vpop.f32.mrb[0].mxu0
        %977 = vmatprep.mubr.f32.mxu0 0.0
        %v978 = vand.u32 %v560, 4294901760
        %v979 = vsub.f32 %v560, %v978
        %v980 = vand.u32 %v979, 4294901760
        %v981 = vsub.f32 %v979, %v980
        %v982 = vand.u32 %v981, 4294901760
        %983 = vmatmul.mubr.f32.gmra.mrb[0].mxu0 %v982
        %v984 = vpop.f32.mrb[0].mxu0
        %v985 = vadd.f32 0.0, %v984
        %v986 = vpop.f32.mrb[0].mxu0
        %987 = vmatprep.mubr.f32.mxu0 0.0
        %v988 = vand.u32 %v563, 4294901760
        %v989 = vsub.f32 %v563, %v988
        %v990 = vand.u32 %v989, 4294901760
        %v991 = vsub.f32 %v989, %v990
        %v992 = vand.u32 %v991, 4294901760
        %993 = vmatmul.mubr.f32.gmra.mrb[0].mxu0 %v992
        %v994 = vpop.f32.mrb[0].mxu0
        %v995 = vadd.f32 0.0, %v994
        %v996 = vpop.f32.mrb[0].mxu0
        %997 = vmatprep.mubr.f32.mxu0 0.0
        %v998 = vand.u32 %v566, 4294901760
        %v999 = vsub.f32 %v566, %v998
        %v1000 = vand.u32 %v999, 4294901760
        %v1001 = vsub.f32 %v999, %v1000
        %v1002 = vand.u32 %v1001, 4294901760
        %1003 = vmatmul.mubr.f32.gmra.mrb[0].mxu0 %v1002
        %v1004 = vpop.f32.mrb[0].mxu0
        %v1005 = vadd.f32 0.0, %v1004
        %v1006 = vpop.f32.mrb[0].mxu0
        %1007 = vdwg.mxu0
        %1008 = vmatprep.subr.mxu0 0.0
        %v1009 = vand.u32 %v448, 4294901760
        %v1010 = vsub.f32 %v448, %v1009
        %v1011 = vand.u32 %v1010, 4294901760
        %v1012 = vsub.f32 %v1010, %v1011
        %v1013 = vand.u32 %v1012, 4294901760
        %1014 = vmatpush1.msra.mxu0 %v1013
        %1015 = vmatprep.subr.mxu0 0.0
        %v1016 = vand.u32 %v449, 4294901760
        %v1017 = vsub.f32 %v449, %v1016
        %v1018 = vand.u32 %v1017, 4294901760
        %v1019 = vsub.f32 %v1017, %v1018
        %v1020 = vand.u32 %v1019, 4294901760
        %1021 = vmatpush1.msra.mxu0 %v1020
        %1022 = vmatprep.subr.mxu0 0.0
        %v1023 = vand.u32 %v450, 4294901760
        %v1024 = vsub.f32 %v450, %v1023
        %v1025 = vand.u32 %v1024, 4294901760
        %v1026 = vsub.f32 %v1024, %v1025
        %v1027 = vand.u32 %v1026, 4294901760
        %1028 = vmatpush1.msra.mxu0 %v1027
        %1029 = vmatprep.subr.mxu0 0.0
        %v1030 = vand.u32 %v451, 4294901760
        %v1031 = vsub.f32 %v451, %v1030
        %v1032 = vand.u32 %v1031, 4294901760
        %v1033 = vsub.f32 %v1031, %v1032
        %v1034 = vand.u32 %v1033, 4294901760
        %1035 = vmatpush1.msra.mxu0 %v1034
        %1036 = vmatprep.subr.mxu0 0.0
        %v1037 = vand.u32 %v452, 4294901760
        %v1038 = vsub.f32 %v452, %v1037
        %v1039 = vand.u32 %v1038, 4294901760
        %v1040 = vsub.f32 %v1038, %v1039
        %v1041 = vand.u32 %v1040, 4294901760
        %1042 = vmatpush1.msra.mxu0 %v1041
        %1043 = vmatprep.subr.mxu0 0.0
        %v1044 = vand.u32 %v453, 4294901760
        %v1045 = vsub.f32 %v453, %v1044
        %v1046 = vand.u32 %v1045, 4294901760
        %v1047 = vsub.f32 %v1045, %v1046
        %v1048 = vand.u32 %v1047, 4294901760
        %1049 = vmatpush1.msra.mxu0 %v1048
        %1050 = vmatprep.subr.mxu0 0.0
        %v1051 = vand.u32 %v454, 4294901760
        %v1052 = vsub.f32 %v454, %v1051
        %v1053 = vand.u32 %v1052, 4294901760
        %v1054 = vsub.f32 %v1052, %v1053
        %v1055 = vand.u32 %v1054, 4294901760
        %1056 = vmatpush1.msra.mxu0 %v1055
        %1057 = vmatprep.subr.mxu0 0.0
        %v1058 = vand.u32 %v455, 4294901760
        %v1059 = vsub.f32 %v455, %v1058
        %v1060 = vand.u32 %v1059, 4294901760
        %v1061 = vsub.f32 %v1059, %v1060
        %v1062 = vand.u32 %v1061, 4294901760
        %1063 = vmatpush1.msra.mxu0 %v1062
        %1064 = vmatprep.subr.mxu0 0.0
        %v1065 = vand.u32 %v456, 4294901760
        %v1066 = vsub.f32 %v456, %v1065
        %v1067 = vand.u32 %v1066, 4294901760
        %v1068 = vsub.f32 %v1066, %v1067
        %v1069 = vand.u32 %v1068, 4294901760
        %1070 = vmatpush1.msra.mxu0 %v1069
        %1071 = vmatprep.subr.mxu0 0.0
        %v1072 = vand.u32 %v457, 4294901760
        %v1073 = vsub.f32 %v457, %v1072
        %v1074 = vand.u32 %v1073, 4294901760
        %v1075 = vsub.f32 %v1073, %v1074
        %v1076 = vand.u32 %v1075, 4294901760
        %1077 = vmatpush1.msra.mxu0 %v1076
        %1078 = vmatprep.subr.mxu0 0.0
        %v1079 = vand.u32 %v570, 4294901760
        %v1080 = vsub.f32 %v570, %v1079
        %v1081 = vand.u32 %v1080, 4294901760
        %v1082 = vsub.f32 %v1080, %v1081
        %v1083 = vand.u32 %v1082, 4294901760
        %1084 = vmatpush1.msra.mxu0 %v1083
        %1085 = vmatprep.subr.mxu0 0.0
        %1086 = vmatpush1.msra.mxu0 0.0
        %1087 = vmatprep.subr.mxu0 0.0
        %1088 = vmatpush1.msra.mxu0 0.0
        %1089 = vmatprep.subr.mxu0 0.0
        %1090 = vmatpush1.msra.mxu0 0.0
        %1091 = vmatprep.subr.mxu0 0.0
        %1092 = vmatpush1.msra.mxu0 0.0
        %1093 = vmatprep.subr.mxu0 0.0
        %1094 = vmatpush1.msra.mxu0 0.0
        %1095 = vmatprep.subr.mxu0 0.0
        %1096 = vmatpush1.msra.mxu0 0.0
        %1097 = vmatprep.subr.mxu0 0.0
        %1098 = vmatpush1.msra.mxu0 0.0
        %1099 = vmatprep.subr.mxu0 0.0
        %1100 = vmatpush1.msra.mxu0 0.0
        %1101 = vmatprep.subr.mxu0 0.0
        %1102 = vmatpush1.msra.mxu0 0.0
        %1103 = vmatprep.subr.mxu0 0.0
        %1104 = vmatpush1.msra.mxu0 0.0
        %1105 = vmatprep.subr.mxu0 0.0
        %1106 = vmatpush1.msra.mxu0 0.0
        %1107 = vmatprep.subr.mxu0 0.0
        %1108 = vmatpush1.msra.mxu0 0.0
        %1109 = vmatprep.subr.mxu0 0.0
        %1110 = vmatpush1.msra.mxu0 0.0
        %1111 = vmatprep.subr.mxu0 0.0
        %1112 = vmatpush1.msra.mxu0 0.0
        %1113 = vmatprep.subr.mxu0 0.0
        %1114 = vmatpush1.msra.mxu0 0.0
        %1115 = vmatprep.subr.mxu0 0.0
        %1116 = vmatpush1.msra.mxu0 0.0
        %1117 = vmatprep.subr.mxu0 0.0
        %1118 = vmatpush1.msra.mxu0 0.0
        %1119 = vmatprep.subr.mxu0 0.0
        %1120 = vmatpush1.msra.mxu0 0.0
        %1121 = vmatprep.subr.mxu0 0.0
        %1122 = vmatpush1.msra.mxu0 0.0
        %1123 = vmatprep.subr.mxu0 0.0
        %1124 = vmatpush1.msra.mxu0 0.0
        %1125 = vmatprep.subr.mxu0 0.0
        %1126 = vmatpush1.msra.mxu0 0.0
        %1127 = vmatprep.mubr.f32.mxu0 0.0
        %v1128 = vand.u32 %v461, 4294901760
        %1129 = vmatmul.mubr.f32.gmra.mrb[0].mxu0 %v1128
        %v1130 = vpop.f32.mrb[0].mxu0
        %v1131 = vadd.f32 %v655, %v1130
        %v1132 = vpop.f32.mrb[0].mxu0
        %1133 = vmatprep.mubr.f32.mxu0 0.0
        %v1134 = vand.u32 %v464, 4294901760
        %1135 = vmatmul.mubr.f32.gmra.mrb[0].mxu0 %v1134
        %v1136 = vpop.f32.mrb[0].mxu0
        %v1137 = vadd.f32 %v665, %v1136
        %v1138 = vpop.f32.mrb[0].mxu0
        %1139 = vmatprep.mubr.f32.mxu0 0.0
        %v1140 = vand.u32 %v467, 4294901760
        %1141 = vmatmul.mubr.f32.gmra.mrb[0].mxu0 %v1140
        %v1142 = vpop.f32.mrb[0].mxu0
        %v1143 = vadd.f32 %v675, %v1142
        %v1144 = vpop.f32.mrb[0].mxu0
        %1145 = vmatprep.mubr.f32.mxu0 0.0
        %v1146 = vand.u32 %v470, 4294901760
        %1147 = vmatmul.mubr.f32.gmra.mrb[0].mxu0 %v1146
        %v1148 = vpop.f32.mrb[0].mxu0
        %v1149 = vadd.f32 %v685, %v1148
        %v1150 = vpop.f32.mrb[0].mxu0
        %1151 = vmatprep.mubr.f32.mxu0 0.0
        %v1152 = vand.u32 %v473, 4294901760
        %1153 = vmatmul.mubr.f32.gmra.mrb[0].mxu0 %v1152
        %v1154 = vpop.f32.mrb[0].mxu0
        %v1155 = vadd.f32 %v695, %v1154
        %v1156 = vpop.f32.mrb[0].mxu0
        %1157 = vmatprep.mubr.f32.mxu0 0.0
        %v1158 = vand.u32 %v476, 4294901760
        %1159 = vmatmul.mubr.f32.gmra.mrb[0].mxu0 %v1158
        %v1160 = vpop.f32.mrb[0].mxu0
        %v1161 = vadd.f32 %v705, %v1160
        %v1162 = vpop.f32.mrb[0].mxu0
        %1163 = vmatprep.mubr.f32.mxu0 0.0
        %v1164 = vand.u32 %v479, 4294901760
        %1165 = vmatmul.mubr.f32.gmra.mrb[0].mxu0 %v1164
        %v1166 = vpop.f32.mrb[0].mxu0
        %v1167 = vadd.f32 %v715, %v1166
        %v1168 = vpop.f32.mrb[0].mxu0
        %1169 = vmatprep.mubr.f32.mxu0 0.0
        %v1170 = vand.u32 %v482, 4294901760
        %1171 = vmatmul.mubr.f32.gmra.mrb[0].mxu0 %v1170
        %v1172 = vpop.f32.mrb[0].mxu0
        %v1173 = vadd.f32 %v725, %v1172
        %v1174 = vpop.f32.mrb[0].mxu0
        %1175 = vmatprep.mubr.f32.mxu0 0.0
        %v1176 = vand.u32 %v485, 4294901760
        %1177 = vmatmul.mubr.f32.gmra.mrb[0].mxu0 %v1176
        %v1178 = vpop.f32.mrb[0].mxu0
        %v1179 = vadd.f32 %v735, %v1178
        %v1180 = vpop.f32.mrb[0].mxu0
        %1181 = vmatprep.mubr.f32.mxu0 0.0
        %v1182 = vand.u32 %v488, 4294901760
        %1183 = vmatmul.mubr.f32.gmra.mrb[0].mxu0 %v1182
        %v1184 = vpop.f32.mrb[0].mxu0
        %v1185 = vadd.f32 %v745, %v1184
        %v1186 = vpop.f32.mrb[0].mxu0
        %1187 = vmatprep.mubr.f32.mxu0 0.0
        %v1188 = vand.u32 %v491, 4294901760
        %1189 = vmatmul.mubr.f32.gmra.mrb[0].mxu0 %v1188
        %v1190 = vpop.f32.mrb[0].mxu0
        %v1191 = vadd.f32 %v755, %v1190
        %v1192 = vpop.f32.mrb[0].mxu0
        %1193 = vmatprep.mubr.f32.mxu0 0.0
        %v1194 = vand.u32 %v494, 4294901760
        %1195 = vmatmul.mubr.f32.gmra.mrb[0].mxu0 %v1194
        %v1196 = vpop.f32.mrb[0].mxu0
        %v1197 = vadd.f32 %v765, %v1196
        %v1198 = vpop.f32.mrb[0].mxu0
        %1199 = vmatprep.mubr.f32.mxu0 0.0
        %v1200 = vand.u32 %v497, 4294901760
        %1201 = vmatmul.mubr.f32.gmra.mrb[0].mxu0 %v1200
        %v1202 = vpop.f32.mrb[0].mxu0
        %v1203 = vadd.f32 %v775, %v1202
        %v1204 = vpop.f32.mrb[0].mxu0
        %1205 = vmatprep.mubr.f32.mxu0 0.0
        %v1206 = vand.u32 %v500, 4294901760
        %1207 = vmatmul.mubr.f32.gmra.mrb[0].mxu0 %v1206
        %v1208 = vpop.f32.mrb[0].mxu0
        %v1209 = vadd.f32 %v785, %v1208
        %v1210 = vpop.f32.mrb[0].mxu0
        %1211 = vmatprep.mubr.f32.mxu0 0.0
        %v1212 = vand.u32 %v503, 4294901760
        %1213 = vmatmul.mubr.f32.gmra.mrb[0].mxu0 %v1212
        %v1214 = vpop.f32.mrb[0].mxu0
        %v1215 = vadd.f32 %v795, %v1214
        %v1216 = vpop.f32.mrb[0].mxu0
        %1217 = vmatprep.mubr.f32.mxu0 0.0
        %v1218 = vand.u32 %v506, 4294901760
        %1219 = vmatmul.mubr.f32.gmra.mrb[0].mxu0 %v1218
        %v1220 = vpop.f32.mrb[0].mxu0
        %v1221 = vadd.f32 %v805, %v1220
        %v1222 = vpop.f32.mrb[0].mxu0
        %1223 = vmatprep.mubr.f32.mxu0 0.0
        %v1224 = vand.u32 %v509, 4294901760
        %1225 = vmatmul.mubr.f32.gmra.mrb[0].mxu0 %v1224
        %v1226 = vpop.f32.mrb[0].mxu0
        %v1227 = vadd.f32 %v815, %v1226
        %v1228 = vpop.f32.mrb[0].mxu0
        %1229 = vmatprep.mubr.f32.mxu0 0.0
        %v1230 = vand.u32 %v512, 4294901760
        %1231 = vmatmul.mubr.f32.gmra.mrb[0].mxu0 %v1230
        %v1232 = vpop.f32.mrb[0].mxu0
        %v1233 = vadd.f32 %v825, %v1232
        %v1234 = vpop.f32.mrb[0].mxu0
        %1235 = vmatprep.mubr.f32.mxu0 0.0
        %v1236 = vand.u32 %v515, 4294901760
        %1237 = vmatmul.mubr.f32.gmra.mrb[0].mxu0 %v1236
        %v1238 = vpop.f32.mrb[0].mxu0
        %v1239 = vadd.f32 %v835, %v1238
        %v1240 = vpop.f32.mrb[0].mxu0
        %1241 = vmatprep.mubr.f32.mxu0 0.0
        %v1242 = vand.u32 %v518, 4294901760
        %1243 = vmatmul.mubr.f32.gmra.mrb[0].mxu0 %v1242
        %v1244 = vpop.f32.mrb[0].mxu0
        %v1245 = vadd.f32 %v845, %v1244
        %v1246 = vpop.f32.mrb[0].mxu0
        %1247 = vmatprep.mubr.f32.mxu0 0.0
        %v1248 = vand.u32 %v521, 4294901760
        %1249 = vmatmul.mubr.f32.gmra.mrb[0].mxu0 %v1248
        %v1250 = vpop.f32.mrb[0].mxu0
        %v1251 = vadd.f32 %v855, %v1250
        %v1252 = vpop.f32.mrb[0].mxu0
        %1253 = vmatprep.mubr.f32.mxu0 0.0
        %v1254 = vand.u32 %v524, 4294901760
        %1255 = vmatmul.mubr.f32.gmra.mrb[0].mxu0 %v1254
        %v1256 = vpop.f32.mrb[0].mxu0
        %v1257 = vadd.f32 %v865, %v1256
        %v1258 = vpop.f32.mrb[0].mxu0
        %1259 = vmatprep.mubr.f32.mxu0 0.0
        %v1260 = vand.u32 %v527, 4294901760
        %1261 = vmatmul.mubr.f32.gmra.mrb[0].mxu0 %v1260
        %v1262 = vpop.f32.mrb[0].mxu0
        %v1263 = vadd.f32 %v875, %v1262
        %v1264 = vpop.f32.mrb[0].mxu0
        %1265 = vmatprep.mubr.f32.mxu0 0.0
        %v1266 = vand.u32 %v530, 4294901760
        %1267 = vmatmul.mubr.f32.gmra.mrb[0].mxu0 %v1266
        %v1268 = vpop.f32.mrb[0].mxu0
        %v1269 = vadd.f32 %v885, %v1268
        %v1270 = vpop.f32.mrb[0].mxu0
        %1271 = vmatprep.mubr.f32.mxu0 0.0
        %v1272 = vand.u32 %v533, 4294901760
        %1273 = vmatmul.mubr.f32.gmra.mrb[0].mxu0 %v1272
        %v1274 = vpop.f32.mrb[0].mxu0
        %v1275 = vadd.f32 %v895, %v1274
        %v1276 = vpop.f32.mrb[0].mxu0
        %1277 = vmatprep.mubr.f32.mxu0 0.0
        %v1278 = vand.u32 %v536, 4294901760
        %1279 = vmatmul.mubr.f32.gmra.mrb[0].mxu0 %v1278
        %v1280 = vpop.f32.mrb[0].mxu0
        %v1281 = vadd.f32 %v905, %v1280
        %v1282 = vpop.f32.mrb[0].mxu0
        %1283 = vmatprep.mubr.f32.mxu0 0.0
        %v1284 = vand.u32 %v539, 4294901760
        %1285 = vmatmul.mubr.f32.gmra.mrb[0].mxu0 %v1284
        %v1286 = vpop.f32.mrb[0].mxu0
        %v1287 = vadd.f32 %v915, %v1286
        %v1288 = vpop.f32.mrb[0].mxu0
        %1289 = vmatprep.mubr.f32.mxu0 0.0
        %v1290 = vand.u32 %v542, 4294901760
        %1291 = vmatmul.mubr.f32.gmra.mrb[0].mxu0 %v1290
        %v1292 = vpop.f32.mrb[0].mxu0
        %v1293 = vadd.f32 %v925, %v1292
        %v1294 = vpop.f32.mrb[0].mxu0
        %1295 = vmatprep.mubr.f32.mxu0 0.0
        %v1296 = vand.u32 %v545, 4294901760
        %1297 = vmatmul.mubr.f32.gmra.mrb[0].mxu0 %v1296
        %v1298 = vpop.f32.mrb[0].mxu0
        %v1299 = vadd.f32 %v935, %v1298
        %v1300 = vpop.f32.mrb[0].mxu0
        %1301 = vmatprep.mubr.f32.mxu0 0.0
        %v1302 = vand.u32 %v548, 4294901760
        %1303 = vmatmul.mubr.f32.gmra.mrb[0].mxu0 %v1302
        %v1304 = vpop.f32.mrb[0].mxu0
        %v1305 = vadd.f32 %v945, %v1304
        %v1306 = vpop.f32.mrb[0].mxu0
        %1307 = vmatprep.mubr.f32.mxu0 0.0
        %v1308 = vand.u32 %v551, 4294901760
        %1309 = vmatmul.mubr.f32.gmra.mrb[0].mxu0 %v1308
        %v1310 = vpop.f32.mrb[0].mxu0
        %v1311 = vadd.f32 %v955, %v1310
        %v1312 = vpop.f32.mrb[0].mxu0
        %1313 = vmatprep.mubr.f32.mxu0 0.0
        %v1314 = vand.u32 %v554, 4294901760
        %1315 = vmatmul.mubr.f32.gmra.mrb[0].mxu0 %v1314
        %v1316 = vpop.f32.mrb[0].mxu0
        %v1317 = vadd.f32 %v965, %v1316
        %v1318 = vpop.f32.mrb[0].mxu0
        %1319 = vmatprep.mubr.f32.mxu0 0.0
        %v1320 = vand.u32 %v557, 4294901760
        %1321 = vmatmul.mubr.f32.gmra.mrb[0].mxu0 %v1320
        %v1322 = vpop.f32.mrb[0].mxu0
        %v1323 = vadd.f32 %v975, %v1322
        %v1324 = vpop.f32.mrb[0].mxu0
        %1325 = vmatprep.mubr.f32.mxu0 0.0
        %v1326 = vand.u32 %v560, 4294901760
        %1327 = vmatmul.mubr.f32.gmra.mrb[0].mxu0 %v1326
        %v1328 = vpop.f32.mrb[0].mxu0
        %v1329 = vadd.f32 %v985, %v1328
        %v1330 = vpop.f32.mrb[0].mxu0
        %1331 = vmatprep.mubr.f32.mxu0 0.0
        %v1332 = vand.u32 %v563, 4294901760
        %1333 = vmatmul.mubr.f32.gmra.mrb[0].mxu0 %v1332
        %v1334 = vpop.f32.mrb[0].mxu0
        %v1335 = vadd.f32 %v995, %v1334
        %v1336 = vpop.f32.mrb[0].mxu0
        %1337 = vmatprep.mubr.f32.mxu0 0.0
        %v1338 = vand.u32 %v566, 4294901760
        %1339 = vmatmul.mubr.f32.gmra.mrb[0].mxu0 %v1338
        %v1340 = vpop.f32.mrb[0].mxu0
        %v1341 = vadd.f32 %v1005, %v1340
        %v1342 = vpop.f32.mrb[0].mxu0
        %1343 = vdwg.mxu0
        %1344 = vmatprep.subr.mxu0 0.0
        %v1345 = vand.u32 %v448, 4294901760
        %v1346 = vsub.f32 %v448, %v1345
        %1347 = vmatpush1.msra.mxu0 %v1346
        %1348 = vmatprep.subr.mxu0 0.0
        %v1349 = vand.u32 %v449, 4294901760
        %v1350 = vsub.f32 %v449, %v1349
        %1351 = vmatpush1.msra.mxu0 %v1350
        %1352 = vmatprep.subr.mxu0 0.0
        %v1353 = vand.u32 %v450, 4294901760
        %v1354 = vsub.f32 %v450, %v1353
        %1355 = vmatpush1.msra.mxu0 %v1354
        %1356 = vmatprep.subr.mxu0 0.0
        %v1357 = vand.u32 %v451, 4294901760
        %v1358 = vsub.f32 %v451, %v1357
        %1359 = vmatpush1.msra.mxu0 %v1358
        %1360 = vmatprep.subr.mxu0 0.0
        %v1361 = vand.u32 %v452, 4294901760
        %v1362 = vsub.f32 %v452, %v1361
        %1363 = vmatpush1.msra.mxu0 %v1362
        %1364 = vmatprep.subr.mxu0 0.0
        %v1365 = vand.u32 %v453, 4294901760
        %v1366 = vsub.f32 %v453, %v1365
        %1367 = vmatpush1.msra.mxu0 %v1366
        %1368 = vmatprep.subr.mxu0 0.0
        %v1369 = vand.u32 %v454, 4294901760
        %v1370 = vsub.f32 %v454, %v1369
        %1371 = vmatpush1.msra.mxu0 %v1370
        %1372 = vmatprep.subr.mxu0 0.0
        %v1373 = vand.u32 %v455, 4294901760
        %v1374 = vsub.f32 %v455, %v1373
        %1375 = vmatpush1.msra.mxu0 %v1374
        %1376 = vmatprep.subr.mxu0 0.0
        %v1377 = vand.u32 %v456, 4294901760
        %v1378 = vsub.f32 %v456, %v1377
        %1379 = vmatpush1.msra.mxu0 %v1378
        %1380 = vmatprep.subr.mxu0 0.0
        %v1381 = vand.u32 %v457, 4294901760
        %v1382 = vsub.f32 %v457, %v1381
        %1383 = vmatpush1.msra.mxu0 %v1382
        %1384 = vmatprep.subr.mxu0 0.0
        %v1385 = vand.u32 %v570, 4294901760
        %v1386 = vsub.f32 %v570, %v1385
        %1387 = vmatpush1.msra.mxu0 %v1386
        %1388 = vmatprep.subr.mxu0 0.0
        %1389 = vmatpush1.msra.mxu0 0.0
        %1390 = vmatprep.subr.mxu0 0.0
        %1391 = vmatpush1.msra.mxu0 0.0
        %1392 = vmatprep.subr.mxu0 0.0
        %1393 = vmatpush1.msra.mxu0 0.0
        %1394 = vmatprep.subr.mxu0 0.0
        %1395 = vmatpush1.msra.mxu0 0.0
        %1396 = vmatprep.subr.mxu0 0.0
        %1397 = vmatpush1.msra.mxu0 0.0
        %1398 = vmatprep.subr.mxu0 0.0
        %1399 = vmatpush1.msra.mxu0 0.0
        %1400 = vmatprep.subr.mxu0 0.0
        %1401 = vmatpush1.msra.mxu0 0.0
        %1402 = vmatprep.subr.mxu0 0.0
        %1403 = vmatpush1.msra.mxu0 0.0
        %1404 = vmatprep.subr.mxu0 0.0
        %1405 = vmatpush1.msra.mxu0 0.0
        %1406 = vmatprep.subr.mxu0 0.0
        %1407 = vmatpush1.msra.mxu0 0.0
        %1408 = vmatprep.subr.mxu0 0.0
        %1409 = vmatpush1.msra.mxu0 0.0
        %1410 = vmatprep.subr.mxu0 0.0
        %1411 = vmatpush1.msra.mxu0 0.0
        %1412 = vmatprep.subr.mxu0 0.0
        %1413 = vmatpush1.msra.mxu0 0.0
        %1414 = vmatprep.subr.mxu0 0.0
        %1415 = vmatpush1.msra.mxu0 0.0
        %1416 = vmatprep.subr.mxu0 0.0
        %1417 = vmatpush1.msra.mxu0 0.0
        %1418 = vmatprep.subr.mxu0 0.0
        %1419 = vmatpush1.msra.mxu0 0.0
        %1420 = vmatprep.subr.mxu0 0.0
        %1421 = vmatpush1.msra.mxu0 0.0
        %1422 = vmatprep.subr.mxu0 0.0
        %1423 = vmatpush1.msra.mxu0 0.0
        %1424 = vmatprep.subr.mxu0 0.0
        %1425 = vmatpush1.msra.mxu0 0.0
        %1426 = vmatprep.subr.mxu0 0.0
        %1427 = vmatpush1.msra.mxu0 0.0
        %1428 = vmatprep.subr.mxu0 0.0
        %1429 = vmatpush1.msra.mxu0 0.0
        %1430 = vmatprep.mubr.f32.mxu0 0.0
        %v1431 = vand.u32 %v461, 4294901760
        %v1432 = vsub.f32 %v461, %v1431
        %1433 = vmatmul.mubr.f32.gmra.mrb[0].mxu0 %v1432
        %v1434 = vpop.f32.mrb[0].mxu0
        %v1435 = vadd.f32 %v1131, %v1434
        %v1436 = vpop.f32.mrb[0].mxu0
        %1437 = vmatprep.mubr.f32.mxu0 0.0
        %v1438 = vand.u32 %v464, 4294901760
        %v1439 = vsub.f32 %v464, %v1438
        %1440 = vmatmul.mubr.f32.gmra.mrb[0].mxu0 %v1439
        %v1441 = vpop.f32.mrb[0].mxu0
        %v1442 = vadd.f32 %v1137, %v1441
        %v1443 = vpop.f32.mrb[0].mxu0
        %1444 = vmatprep.mubr.f32.mxu0 0.0
        %v1445 = vand.u32 %v467, 4294901760
        %v1446 = vsub.f32 %v467, %v1445
        %1447 = vmatmul.mubr.f32.gmra.mrb[0].mxu0 %v1446
        %v1448 = vpop.f32.mrb[0].mxu0
        %v1449 = vadd.f32 %v1143, %v1448
        %v1450 = vpop.f32.mrb[0].mxu0
        %1451 = vmatprep.mubr.f32.mxu0 0.0
        %v1452 = vand.u32 %v470, 4294901760
        %v1453 = vsub.f32 %v470, %v1452
        %1454 = vmatmul.mubr.f32.gmra.mrb[0].mxu0 %v1453
        %v1455 = vpop.f32.mrb[0].mxu0
        %v1456 = vadd.f32 %v1149, %v1455
        %v1457 = vpop.f32.mrb[0].mxu0
        %1458 = vmatprep.mubr.f32.mxu0 0.0
        %v1459 = vand.u32 %v473, 4294901760
        %v1460 = vsub.f32 %v473, %v1459
        %1461 = vmatmul.mubr.f32.gmra.mrb[0].mxu0 %v1460
        %v1462 = vpop.f32.mrb[0].mxu0
        %v1463 = vadd.f32 %v1155, %v1462
        %v1464 = vpop.f32.mrb[0].mxu0
        %1465 = vmatprep.mubr.f32.mxu0 0.0
        %v1466 = vand.u32 %v476, 4294901760
        %v1467 = vsub.f32 %v476, %v1466
        %1468 = vmatmul.mubr.f32.gmra.mrb[0].mxu0 %v1467
        %v1469 = vpop.f32.mrb[0].mxu0
        %v1470 = vadd.f32 %v1161, %v1469
        %v1471 = vpop.f32.mrb[0].mxu0
        %1472 = vmatprep.mubr.f32.mxu0 0.0
        %v1473 = vand.u32 %v479, 4294901760
        %v1474 = vsub.f32 %v479, %v1473
        %1475 = vmatmul.mubr.f32.gmra.mrb[0].mxu0 %v1474
        %v1476 = vpop.f32.mrb[0].mxu0
        %v1477 = vadd.f32 %v1167, %v1476
        %v1478 = vpop.f32.mrb[0].mxu0
        %1479 = vmatprep.mubr.f32.mxu0 0.0
        %v1480 = vand.u32 %v482, 4294901760
        %v1481 = vsub.f32 %v482, %v1480
        %1482 = vmatmul.mubr.f32.gmra.mrb[0].mxu0 %v1481
        %v1483 = vpop.f32.mrb[0].mxu0
        %v1484 = vadd.f32 %v1173, %v1483
        %v1485 = vpop.f32.mrb[0].mxu0
        %1486 = vmatprep.mubr.f32.mxu0 0.0
        %v1487 = vand.u32 %v485, 4294901760
        %v1488 = vsub.f32 %v485, %v1487
        %1489 = vmatmul.mubr.f32.gmra.mrb[0].mxu0 %v1488
        %v1490 = vpop.f32.mrb[0].mxu0
        %v1491 = vadd.f32 %v1179, %v1490
        %v1492 = vpop.f32.mrb[0].mxu0
        %1493 = vmatprep.mubr.f32.mxu0 0.0
        %v1494 = vand.u32 %v488, 4294901760
        %v1495 = vsub.f32 %v488, %v1494
        %1496 = vmatmul.mubr.f32.gmra.mrb[0].mxu0 %v1495
        %v1497 = vpop.f32.mrb[0].mxu0
        %v1498 = vadd.f32 %v1185, %v1497
        %v1499 = vpop.f32.mrb[0].mxu0
        %1500 = vmatprep.mubr.f32.mxu0 0.0
        %v1501 = vand.u32 %v491, 4294901760
        %v1502 = vsub.f32 %v491, %v1501
        %1503 = vmatmul.mubr.f32.gmra.mrb[0].mxu0 %v1502
        %v1504 = vpop.f32.mrb[0].mxu0
        %v1505 = vadd.f32 %v1191, %v1504
        %v1506 = vpop.f32.mrb[0].mxu0
        %1507 = vmatprep.mubr.f32.mxu0 0.0
        %v1508 = vand.u32 %v494, 4294901760
        %v1509 = vsub.f32 %v494, %v1508
        %1510 = vmatmul.mubr.f32.gmra.mrb[0].mxu0 %v1509
        %v1511 = vpop.f32.mrb[0].mxu0
        %v1512 = vadd.f32 %v1197, %v1511
        %v1513 = vpop.f32.mrb[0].mxu0
        %1514 = vmatprep.mubr.f32.mxu0 0.0
        %v1515 = vand.u32 %v497, 4294901760
        %v1516 = vsub.f32 %v497, %v1515
        %1517 = vmatmul.mubr.f32.gmra.mrb[0].mxu0 %v1516
        %v1518 = vpop.f32.mrb[0].mxu0
        %v1519 = vadd.f32 %v1203, %v1518
        %v1520 = vpop.f32.mrb[0].mxu0
        %1521 = vmatprep.mubr.f32.mxu0 0.0
        %v1522 = vand.u32 %v500, 4294901760
        %v1523 = vsub.f32 %v500, %v1522
        %1524 = vmatmul.mubr.f32.gmra.mrb[0].mxu0 %v1523
        %v1525 = vpop.f32.mrb[0].mxu0
        %v1526 = vadd.f32 %v1209, %v1525
        %v1527 = vpop.f32.mrb[0].mxu0
        %1528 = vmatprep.mubr.f32.mxu0 0.0
        %v1529 = vand.u32 %v503, 4294901760
        %v1530 = vsub.f32 %v503, %v1529
        %1531 = vmatmul.mubr.f32.gmra.mrb[0].mxu0 %v1530
        %v1532 = vpop.f32.mrb[0].mxu0
        %v1533 = vadd.f32 %v1215, %v1532
        %v1534 = vpop.f32.mrb[0].mxu0
        %1535 = vmatprep.mubr.f32.mxu0 0.0
        %v1536 = vand.u32 %v506, 4294901760
        %v1537 = vsub.f32 %v506, %v1536
        %1538 = vmatmul.mubr.f32.gmra.mrb[0].mxu0 %v1537
        %v1539 = vpop.f32.mrb[0].mxu0
        %v1540 = vadd.f32 %v1221, %v1539
        %v1541 = vpop.f32.mrb[0].mxu0
        %1542 = vmatprep.mubr.f32.mxu0 0.0
        %v1543 = vand.u32 %v509, 4294901760
        %v1544 = vsub.f32 %v509, %v1543
        %1545 = vmatmul.mubr.f32.gmra.mrb[0].mxu0 %v1544
        %v1546 = vpop.f32.mrb[0].mxu0
        %v1547 = vadd.f32 %v1227, %v1546
        %v1548 = vpop.f32.mrb[0].mxu0
        %1549 = vmatprep.mubr.f32.mxu0 0.0
        %v1550 = vand.u32 %v512, 4294901760
        %v1551 = vsub.f32 %v512, %v1550
        %1552 = vmatmul.mubr.f32.gmra.mrb[0].mxu0 %v1551
        %v1553 = vpop.f32.mrb[0].mxu0
        %v1554 = vadd.f32 %v1233, %v1553
        %v1555 = vpop.f32.mrb[0].mxu0
        %1556 = vmatprep.mubr.f32.mxu0 0.0
        %v1557 = vand.u32 %v515, 4294901760
        %v1558 = vsub.f32 %v515, %v1557
        %1559 = vmatmul.mubr.f32.gmra.mrb[0].mxu0 %v1558
        %v1560 = vpop.f32.mrb[0].mxu0
        %v1561 = vadd.f32 %v1239, %v1560
        %v1562 = vpop.f32.mrb[0].mxu0
        %1563 = vmatprep.mubr.f32.mxu0 0.0
        %v1564 = vand.u32 %v518, 4294901760
        %v1565 = vsub.f32 %v518, %v1564
        %1566 = vmatmul.mubr.f32.gmra.mrb[0].mxu0 %v1565
        %v1567 = vpop.f32.mrb[0].mxu0
        %v1568 = vadd.f32 %v1245, %v1567
        %v1569 = vpop.f32.mrb[0].mxu0
        %1570 = vmatprep.mubr.f32.mxu0 0.0
        %v1571 = vand.u32 %v521, 4294901760
        %v1572 = vsub.f32 %v521, %v1571
        %1573 = vmatmul.mubr.f32.gmra.mrb[0].mxu0 %v1572
        %v1574 = vpop.f32.mrb[0].mxu0
        %v1575 = vadd.f32 %v1251, %v1574
        %v1576 = vpop.f32.mrb[0].mxu0
        %1577 = vmatprep.mubr.f32.mxu0 0.0
        %v1578 = vand.u32 %v524, 4294901760
        %v1579 = vsub.f32 %v524, %v1578
        %1580 = vmatmul.mubr.f32.gmra.mrb[0].mxu0 %v1579
        %v1581 = vpop.f32.mrb[0].mxu0
        %v1582 = vadd.f32 %v1257, %v1581
        %v1583 = vpop.f32.mrb[0].mxu0
        %1584 = vmatprep.mubr.f32.mxu0 0.0
        %v1585 = vand.u32 %v527, 4294901760
        %v1586 = vsub.f32 %v527, %v1585
        %1587 = vmatmul.mubr.f32.gmra.mrb[0].mxu0 %v1586
        %v1588 = vpop.f32.mrb[0].mxu0
        %v1589 = vadd.f32 %v1263, %v1588
        %v1590 = vpop.f32.mrb[0].mxu0
        %1591 = vmatprep.mubr.f32.mxu0 0.0
        %v1592 = vand.u32 %v530, 4294901760
        %v1593 = vsub.f32 %v530, %v1592
        %1594 = vmatmul.mubr.f32.gmra.mrb[0].mxu0 %v1593
        %v1595 = vpop.f32.mrb[0].mxu0
        %v1596 = vadd.f32 %v1269, %v1595
        %v1597 = vpop.f32.mrb[0].mxu0
        %1598 = vmatprep.mubr.f32.mxu0 0.0
        %v1599 = vand.u32 %v533, 4294901760
        %v1600 = vsub.f32 %v533, %v1599
        %1601 = vmatmul.mubr.f32.gmra.mrb[0].mxu0 %v1600
        %v1602 = vpop.f32.mrb[0].mxu0
        %v1603 = vadd.f32 %v1275, %v1602
        %v1604 = vpop.f32.mrb[0].mxu0
        %1605 = vmatprep.mubr.f32.mxu0 0.0
        %v1606 = vand.u32 %v536, 4294901760
        %v1607 = vsub.f32 %v536, %v1606
        %1608 = vmatmul.mubr.f32.gmra.mrb[0].mxu0 %v1607
        %v1609 = vpop.f32.mrb[0].mxu0
        %v1610 = vadd.f32 %v1281, %v1609
        %v1611 = vpop.f32.mrb[0].mxu0
        %1612 = vmatprep.mubr.f32.mxu0 0.0
        %v1613 = vand.u32 %v539, 4294901760
        %v1614 = vsub.f32 %v539, %v1613
        %1615 = vmatmul.mubr.f32.gmra.mrb[0].mxu0 %v1614
        %v1616 = vpop.f32.mrb[0].mxu0
        %v1617 = vadd.f32 %v1287, %v1616
        %v1618 = vpop.f32.mrb[0].mxu0
        %1619 = vmatprep.mubr.f32.mxu0 0.0
        %v1620 = vand.u32 %v542, 4294901760
        %v1621 = vsub.f32 %v542, %v1620
        %1622 = vmatmul.mubr.f32.gmra.mrb[0].mxu0 %v1621
        %v1623 = vpop.f32.mrb[0].mxu0
        %v1624 = vadd.f32 %v1293, %v1623
        %v1625 = vpop.f32.mrb[0].mxu0
        %1626 = vmatprep.mubr.f32.mxu0 0.0
        %v1627 = vand.u32 %v545, 4294901760
        %v1628 = vsub.f32 %v545, %v1627
        %1629 = vmatmul.mubr.f32.gmra.mrb[0].mxu0 %v1628
        %v1630 = vpop.f32.mrb[0].mxu0
        %v1631 = vadd.f32 %v1299, %v1630
        %v1632 = vpop.f32.mrb[0].mxu0
        %1633 = vmatprep.mubr.f32.mxu0 0.0
        %v1634 = vand.u32 %v548, 4294901760
        %v1635 = vsub.f32 %v548, %v1634
        %1636 = vmatmul.mubr.f32.gmra.mrb[0].mxu0 %v1635
        %v1637 = vpop.f32.mrb[0].mxu0
        %v1638 = vadd.f32 %v1305, %v1637
        %v1639 = vpop.f32.mrb[0].mxu0
        %1640 = vmatprep.mubr.f32.mxu0 0.0
        %v1641 = vand.u32 %v551, 4294901760
        %v1642 = vsub.f32 %v551, %v1641
        %1643 = vmatmul.mubr.f32.gmra.mrb[0].mxu0 %v1642
        %v1644 = vpop.f32.mrb[0].mxu0
        %v1645 = vadd.f32 %v1311, %v1644
        %v1646 = vpop.f32.mrb[0].mxu0
        %1647 = vmatprep.mubr.f32.mxu0 0.0
        %v1648 = vand.u32 %v554, 4294901760
        %v1649 = vsub.f32 %v554, %v1648
        %1650 = vmatmul.mubr.f32.gmra.mrb[0].mxu0 %v1649
        %v1651 = vpop.f32.mrb[0].mxu0
        %v1652 = vadd.f32 %v1317, %v1651
        %v1653 = vpop.f32.mrb[0].mxu0
        %1654 = vmatprep.mubr.f32.mxu0 0.0
        %v1655 = vand.u32 %v557, 4294901760
        %v1656 = vsub.f32 %v557, %v1655
        %1657 = vmatmul.mubr.f32.gmra.mrb[0].mxu0 %v1656
        %v1658 = vpop.f32.mrb[0].mxu0
        %v1659 = vadd.f32 %v1323, %v1658
        %v1660 = vpop.f32.mrb[0].mxu0
        %1661 = vmatprep.mubr.f32.mxu0 0.0
        %v1662 = vand.u32 %v560, 4294901760
        %v1663 = vsub.f32 %v560, %v1662
        %1664 = vmatmul.mubr.f32.gmra.mrb[0].mxu0 %v1663
        %v1665 = vpop.f32.mrb[0].mxu0
        %v1666 = vadd.f32 %v1329, %v1665
        %v1667 = vpop.f32.mrb[0].mxu0
        %1668 = vmatprep.mubr.f32.mxu0 0.0
        %v1669 = vand.u32 %v563, 4294901760
        %v1670 = vsub.f32 %v563, %v1669
        %1671 = vmatmul.mubr.f32.gmra.mrb[0].mxu0 %v1670
        %v1672 = vpop.f32.mrb[0].mxu0
        %v1673 = vadd.f32 %v1335, %v1672
        %v1674 = vpop.f32.mrb[0].mxu0
        %1675 = vmatprep.mubr.f32.mxu0 0.0
        %v1676 = vand.u32 %v566, 4294901760
        %v1677 = vsub.f32 %v566, %v1676
        %1678 = vmatmul.mubr.f32.gmra.mrb[0].mxu0 %v1677
        %v1679 = vpop.f32.mrb[0].mxu0
        %v1680 = vadd.f32 %v1341, %v1679
        %v1681 = vpop.f32.mrb[0].mxu0
        %1682 = vdwg.mxu0
        %1683 = vmatprep.subr.mxu0 0.0
        %v1684 = vand.u32 %v448, 4294901760
        %1685 = vmatpush1.msra.mxu0 %v1684
        %1686 = vmatprep.subr.mxu0 0.0
        %v1687 = vand.u32 %v449, 4294901760
        %1688 = vmatpush1.msra.mxu0 %v1687
        %1689 = vmatprep.subr.mxu0 0.0
        %v1690 = vand.u32 %v450, 4294901760
        %1691 = vmatpush1.msra.mxu0 %v1690
        %1692 = vmatprep.subr.mxu0 0.0
        %v1693 = vand.u32 %v451, 4294901760
        %1694 = vmatpush1.msra.mxu0 %v1693
        %1695 = vmatprep.subr.mxu0 0.0
        %v1696 = vand.u32 %v452, 4294901760
        %1697 = vmatpush1.msra.mxu0 %v1696
        %1698 = vmatprep.subr.mxu0 0.0
        %v1699 = vand.u32 %v453, 4294901760
        %1700 = vmatpush1.msra.mxu0 %v1699
        %1701 = vmatprep.subr.mxu0 0.0
        %v1702 = vand.u32 %v454, 4294901760
        %1703 = vmatpush1.msra.mxu0 %v1702
        %1704 = vmatprep.subr.mxu0 0.0
        %v1705 = vand.u32 %v455, 4294901760
        %1706 = vmatpush1.msra.mxu0 %v1705
        %1707 = vmatprep.subr.mxu0 0.0
        %v1708 = vand.u32 %v456, 4294901760
        %1709 = vmatpush1.msra.mxu0 %v1708
        %1710 = vmatprep.subr.mxu0 0.0
        %v1711 = vand.u32 %v457, 4294901760
        %1712 = vmatpush1.msra.mxu0 %v1711
        %1713 = vmatprep.subr.mxu0 0.0
        %v1714 = vand.u32 %v570, 4294901760
        %1715 = vmatpush1.msra.mxu0 %v1714
        %1716 = vmatprep.subr.mxu0 0.0
        %1717 = vmatpush1.msra.mxu0 0.0
        %1718 = vmatprep.subr.mxu0 0.0
        %1719 = vmatpush1.msra.mxu0 0.0
        %1720 = vmatprep.subr.mxu0 0.0
        %1721 = vmatpush1.msra.mxu0 0.0
        %1722 = vmatprep.subr.mxu0 0.0
        %1723 = vmatpush1.msra.mxu0 0.0
        %1724 = vmatprep.subr.mxu0 0.0
        %1725 = vmatpush1.msra.mxu0 0.0
        %1726 = vmatprep.subr.mxu0 0.0
        %1727 = vmatpush1.msra.mxu0 0.0
        %1728 = vmatprep.subr.mxu0 0.0
        %1729 = vmatpush1.msra.mxu0 0.0
        %1730 = vmatprep.subr.mxu0 0.0
        %1731 = vmatpush1.msra.mxu0 0.0
        %1732 = vmatprep.subr.mxu0 0.0
        %1733 = vmatpush1.msra.mxu0 0.0
        %1734 = vmatprep.subr.mxu0 0.0
        %1735 = vmatpush1.msra.mxu0 0.0
        %1736 = vmatprep.subr.mxu0 0.0
        %1737 = vmatpush1.msra.mxu0 0.0
        %1738 = vmatprep.subr.mxu0 0.0
        %1739 = vmatpush1.msra.mxu0 0.0
        %1740 = vmatprep.subr.mxu0 0.0
        %1741 = vmatpush1.msra.mxu0 0.0
        %1742 = vmatprep.subr.mxu0 0.0
        %1743 = vmatpush1.msra.mxu0 0.0
        %1744 = vmatprep.subr.mxu0 0.0
        %1745 = vmatpush1.msra.mxu0 0.0
        %1746 = vmatprep.subr.mxu0 0.0
        %1747 = vmatpush1.msra.mxu0 0.0
        %1748 = vmatprep.subr.mxu0 0.0
        %1749 = vmatpush1.msra.mxu0 0.0
        %1750 = vmatprep.subr.mxu0 0.0
        %1751 = vmatpush1.msra.mxu0 0.0
        %1752 = vmatprep.subr.mxu0 0.0
        %1753 = vmatpush1.msra.mxu0 0.0
        %1754 = vmatprep.subr.mxu0 0.0
        %1755 = vmatpush1.msra.mxu0 0.0
        %1756 = vmatprep.subr.mxu0 0.0
        %1757 = vmatpush1.msra.mxu0 0.0
        %1758 = vmatprep.mubr.f32.mxu0 0.0
        %v1759 = vand.u32 %v461, 4294901760
        %v1760 = vsub.f32 %v461, %v1759
        %v1761 = vand.u32 %v1760, 4294901760
        %1762 = vmatmul.mubr.f32.gmra.mrb[0].mxu0 %v1761
        %v1763 = vpop.f32.mrb[0].mxu0
        %v1764 = vadd.f32 %v1435, %v1763
        %v1765 = vpop.f32.mrb[0].mxu0
        %1766 = vmatprep.mubr.f32.mxu0 0.0
        %v1767 = vand.u32 %v464, 4294901760
        %v1768 = vsub.f32 %v464, %v1767
        %v1769 = vand.u32 %v1768, 4294901760
        %1770 = vmatmul.mubr.f32.gmra.mrb[0].mxu0 %v1769
        %v1771 = vpop.f32.mrb[0].mxu0
        %v1772 = vadd.f32 %v1442, %v1771
        %v1773 = vpop.f32.mrb[0].mxu0
        %1774 = vmatprep.mubr.f32.mxu0 0.0
        %v1775 = vand.u32 %v467, 4294901760
        %v1776 = vsub.f32 %v467, %v1775
        %v1777 = vand.u32 %v1776, 4294901760
        %1778 = vmatmul.mubr.f32.gmra.mrb[0].mxu0 %v1777
        %v1779 = vpop.f32.mrb[0].mxu0
        %v1780 = vadd.f32 %v1449, %v1779
        %v1781 = vpop.f32.mrb[0].mxu0
        %1782 = vmatprep.mubr.f32.mxu0 0.0
        %v1783 = vand.u32 %v470, 4294901760
        %v1784 = vsub.f32 %v470, %v1783
        %v1785 = vand.u32 %v1784, 4294901760
        %1786 = vmatmul.mubr.f32.gmra.mrb[0].mxu0 %v1785
        %v1787 = vpop.f32.mrb[0].mxu0
        %v1788 = vadd.f32 %v1456, %v1787
        %v1789 = vpop.f32.mrb[0].mxu0
        %1790 = vmatprep.mubr.f32.mxu0 0.0
        %v1791 = vand.u32 %v473, 4294901760
        %v1792 = vsub.f32 %v473, %v1791
        %v1793 = vand.u32 %v1792, 4294901760
        %1794 = vmatmul.mubr.f32.gmra.mrb[0].mxu0 %v1793
        %v1795 = vpop.f32.mrb[0].mxu0
        %v1796 = vadd.f32 %v1463, %v1795
        %v1797 = vpop.f32.mrb[0].mxu0
        %1798 = vmatprep.mubr.f32.mxu0 0.0
        %v1799 = vand.u32 %v476, 4294901760
        %v1800 = vsub.f32 %v476, %v1799
        %v1801 = vand.u32 %v1800, 4294901760
        %1802 = vmatmul.mubr.f32.gmra.mrb[0].mxu0 %v1801
        %v1803 = vpop.f32.mrb[0].mxu0
        %v1804 = vadd.f32 %v1470, %v1803
        %v1805 = vpop.f32.mrb[0].mxu0
        %1806 = vmatprep.mubr.f32.mxu0 0.0
        %v1807 = vand.u32 %v479, 4294901760
        %v1808 = vsub.f32 %v479, %v1807
        %v1809 = vand.u32 %v1808, 4294901760
        %1810 = vmatmul.mubr.f32.gmra.mrb[0].mxu0 %v1809
        %v1811 = vpop.f32.mrb[0].mxu0
        %v1812 = vadd.f32 %v1477, %v1811
        %v1813 = vpop.f32.mrb[0].mxu0
        %1814 = vmatprep.mubr.f32.mxu0 0.0
        %v1815 = vand.u32 %v482, 4294901760
        %v1816 = vsub.f32 %v482, %v1815
        %v1817 = vand.u32 %v1816, 4294901760
        %1818 = vmatmul.mubr.f32.gmra.mrb[0].mxu0 %v1817
        %v1819 = vpop.f32.mrb[0].mxu0
        %v1820 = vadd.f32 %v1484, %v1819
        %v1821 = vpop.f32.mrb[0].mxu0
        %1822 = vmatprep.mubr.f32.mxu0 0.0
        %v1823 = vand.u32 %v485, 4294901760
        %v1824 = vsub.f32 %v485, %v1823
        %v1825 = vand.u32 %v1824, 4294901760
        %1826 = vmatmul.mubr.f32.gmra.mrb[0].mxu0 %v1825
        %v1827 = vpop.f32.mrb[0].mxu0
        %v1828 = vadd.f32 %v1491, %v1827
        %v1829 = vpop.f32.mrb[0].mxu0
        %1830 = vmatprep.mubr.f32.mxu0 0.0
        %v1831 = vand.u32 %v488, 4294901760
        %v1832 = vsub.f32 %v488, %v1831
        %v1833 = vand.u32 %v1832, 4294901760
        %1834 = vmatmul.mubr.f32.gmra.mrb[0].mxu0 %v1833
        %v1835 = vpop.f32.mrb[0].mxu0
        %v1836 = vadd.f32 %v1498, %v1835
        %v1837 = vpop.f32.mrb[0].mxu0
        %1838 = vmatprep.mubr.f32.mxu0 0.0
        %v1839 = vand.u32 %v491, 4294901760
        %v1840 = vsub.f32 %v491, %v1839
        %v1841 = vand.u32 %v1840, 4294901760
        %1842 = vmatmul.mubr.f32.gmra.mrb[0].mxu0 %v1841
        %v1843 = vpop.f32.mrb[0].mxu0
        %v1844 = vadd.f32 %v1505, %v1843
        %v1845 = vpop.f32.mrb[0].mxu0
        %1846 = vmatprep.mubr.f32.mxu0 0.0
        %v1847 = vand.u32 %v494, 4294901760
        %v1848 = vsub.f32 %v494, %v1847
        %v1849 = vand.u32 %v1848, 4294901760
        %1850 = vmatmul.mubr.f32.gmra.mrb[0].mxu0 %v1849
        %v1851 = vpop.f32.mrb[0].mxu0
        %v1852 = vadd.f32 %v1512, %v1851
        %v1853 = vpop.f32.mrb[0].mxu0
        %1854 = vmatprep.mubr.f32.mxu0 0.0
        %v1855 = vand.u32 %v497, 4294901760
        %v1856 = vsub.f32 %v497, %v1855
        %v1857 = vand.u32 %v1856, 4294901760
        %1858 = vmatmul.mubr.f32.gmra.mrb[0].mxu0 %v1857
        %v1859 = vpop.f32.mrb[0].mxu0
        %v1860 = vadd.f32 %v1519, %v1859
        %v1861 = vpop.f32.mrb[0].mxu0
        %1862 = vmatprep.mubr.f32.mxu0 0.0
        %v1863 = vand.u32 %v500, 4294901760
        %v1864 = vsub.f32 %v500, %v1863
        %v1865 = vand.u32 %v1864, 4294901760
        %1866 = vmatmul.mubr.f32.gmra.mrb[0].mxu0 %v1865
        %v1867 = vpop.f32.mrb[0].mxu0
        %v1868 = vadd.f32 %v1526, %v1867
        %v1869 = vpop.f32.mrb[0].mxu0
        %1870 = vmatprep.mubr.f32.mxu0 0.0
        %v1871 = vand.u32 %v503, 4294901760
        %v1872 = vsub.f32 %v503, %v1871
        %v1873 = vand.u32 %v1872, 4294901760
        %1874 = vmatmul.mubr.f32.gmra.mrb[0].mxu0 %v1873
        %v1875 = vpop.f32.mrb[0].mxu0
        %v1876 = vadd.f32 %v1533, %v1875
        %v1877 = vpop.f32.mrb[0].mxu0
        %1878 = vmatprep.mubr.f32.mxu0 0.0
        %v1879 = vand.u32 %v506, 4294901760
        %v1880 = vsub.f32 %v506, %v1879
        %v1881 = vand.u32 %v1880, 4294901760
        %1882 = vmatmul.mubr.f32.gmra.mrb[0].mxu0 %v1881
        %v1883 = vpop.f32.mrb[0].mxu0
        %v1884 = vadd.f32 %v1540, %v1883
        %v1885 = vpop.f32.mrb[0].mxu0
        %1886 = vmatprep.mubr.f32.mxu0 0.0
        %v1887 = vand.u32 %v509, 4294901760
        %v1888 = vsub.f32 %v509, %v1887
        %v1889 = vand.u32 %v1888, 4294901760
        %1890 = vmatmul.mubr.f32.gmra.mrb[0].mxu0 %v1889
        %v1891 = vpop.f32.mrb[0].mxu0
        %v1892 = vadd.f32 %v1547, %v1891
        %v1893 = vpop.f32.mrb[0].mxu0
        %1894 = vmatprep.mubr.f32.mxu0 0.0
        %v1895 = vand.u32 %v512, 4294901760
        %v1896 = vsub.f32 %v512, %v1895
        %v1897 = vand.u32 %v1896, 4294901760
        %1898 = vmatmul.mubr.f32.gmra.mrb[0].mxu0 %v1897
        %v1899 = vpop.f32.mrb[0].mxu0
        %v1900 = vadd.f32 %v1554, %v1899
        %v1901 = vpop.f32.mrb[0].mxu0
        %1902 = vmatprep.mubr.f32.mxu0 0.0
        %v1903 = vand.u32 %v515, 4294901760
        %v1904 = vsub.f32 %v515, %v1903
        %v1905 = vand.u32 %v1904, 4294901760
        %1906 = vmatmul.mubr.f32.gmra.mrb[0].mxu0 %v1905
        %v1907 = vpop.f32.mrb[0].mxu0
        %v1908 = vadd.f32 %v1561, %v1907
        %v1909 = vpop.f32.mrb[0].mxu0
        %1910 = vmatprep.mubr.f32.mxu0 0.0
        %v1911 = vand.u32 %v518, 4294901760
        %v1912 = vsub.f32 %v518, %v1911
        %v1913 = vand.u32 %v1912, 4294901760
        %1914 = vmatmul.mubr.f32.gmra.mrb[0].mxu0 %v1913
        %v1915 = vpop.f32.mrb[0].mxu0
        %v1916 = vadd.f32 %v1568, %v1915
        %v1917 = vpop.f32.mrb[0].mxu0
        %1918 = vmatprep.mubr.f32.mxu0 0.0
        %v1919 = vand.u32 %v521, 4294901760
        %v1920 = vsub.f32 %v521, %v1919
        %v1921 = vand.u32 %v1920, 4294901760
        %1922 = vmatmul.mubr.f32.gmra.mrb[0].mxu0 %v1921
        %v1923 = vpop.f32.mrb[0].mxu0
        %v1924 = vadd.f32 %v1575, %v1923
        %v1925 = vpop.f32.mrb[0].mxu0
        %1926 = vmatprep.mubr.f32.mxu0 0.0
        %v1927 = vand.u32 %v524, 4294901760
        %v1928 = vsub.f32 %v524, %v1927
        %v1929 = vand.u32 %v1928, 4294901760
        %1930 = vmatmul.mubr.f32.gmra.mrb[0].mxu0 %v1929
        %v1931 = vpop.f32.mrb[0].mxu0
        %v1932 = vadd.f32 %v1582, %v1931
        %v1933 = vpop.f32.mrb[0].mxu0
        %1934 = vmatprep.mubr.f32.mxu0 0.0
        %v1935 = vand.u32 %v527, 4294901760
        %v1936 = vsub.f32 %v527, %v1935
        %v1937 = vand.u32 %v1936, 4294901760
        %1938 = vmatmul.mubr.f32.gmra.mrb[0].mxu0 %v1937
        %v1939 = vpop.f32.mrb[0].mxu0
        %v1940 = vadd.f32 %v1589, %v1939
        %v1941 = vpop.f32.mrb[0].mxu0
        %1942 = vmatprep.mubr.f32.mxu0 0.0
        %v1943 = vand.u32 %v530, 4294901760
        %v1944 = vsub.f32 %v530, %v1943
        %v1945 = vand.u32 %v1944, 4294901760
        %1946 = vmatmul.mubr.f32.gmra.mrb[0].mxu0 %v1945
        %v1947 = vpop.f32.mrb[0].mxu0
        %v1948 = vadd.f32 %v1596, %v1947
        %v1949 = vpop.f32.mrb[0].mxu0
        %1950 = vmatprep.mubr.f32.mxu0 0.0
        %v1951 = vand.u32 %v533, 4294901760
        %v1952 = vsub.f32 %v533, %v1951
        %v1953 = vand.u32 %v1952, 4294901760
        %1954 = vmatmul.mubr.f32.gmra.mrb[0].mxu0 %v1953
        %v1955 = vpop.f32.mrb[0].mxu0
        %v1956 = vadd.f32 %v1603, %v1955
        %v1957 = vpop.f32.mrb[0].mxu0
        %1958 = vmatprep.mubr.f32.mxu0 0.0
        %v1959 = vand.u32 %v536, 4294901760
        %v1960 = vsub.f32 %v536, %v1959
        %v1961 = vand.u32 %v1960, 4294901760
        %1962 = vmatmul.mubr.f32.gmra.mrb[0].mxu0 %v1961
        %v1963 = vpop.f32.mrb[0].mxu0
        %v1964 = vadd.f32 %v1610, %v1963
        %v1965 = vpop.f32.mrb[0].mxu0
        %1966 = vmatprep.mubr.f32.mxu0 0.0
        %v1967 = vand.u32 %v539, 4294901760
        %v1968 = vsub.f32 %v539, %v1967
        %v1969 = vand.u32 %v1968, 4294901760
        %1970 = vmatmul.mubr.f32.gmra.mrb[0].mxu0 %v1969
        %v1971 = vpop.f32.mrb[0].mxu0
        %v1972 = vadd.f32 %v1617, %v1971
        %v1973 = vpop.f32.mrb[0].mxu0
        %1974 = vmatprep.mubr.f32.mxu0 0.0
        %v1975 = vand.u32 %v542, 4294901760
        %v1976 = vsub.f32 %v542, %v1975
        %v1977 = vand.u32 %v1976, 4294901760
        %1978 = vmatmul.mubr.f32.gmra.mrb[0].mxu0 %v1977
        %v1979 = vpop.f32.mrb[0].mxu0
        %v1980 = vadd.f32 %v1624, %v1979
        %v1981 = vpop.f32.mrb[0].mxu0
        %1982 = vmatprep.mubr.f32.mxu0 0.0
        %v1983 = vand.u32 %v545, 4294901760
        %v1984 = vsub.f32 %v545, %v1983
        %v1985 = vand.u32 %v1984, 4294901760
        %1986 = vmatmul.mubr.f32.gmra.mrb[0].mxu0 %v1985
        %v1987 = vpop.f32.mrb[0].mxu0
        %v1988 = vadd.f32 %v1631, %v1987
        %v1989 = vpop.f32.mrb[0].mxu0
        %1990 = vmatprep.mubr.f32.mxu0 0.0
        %v1991 = vand.u32 %v548, 4294901760
        %v1992 = vsub.f32 %v548, %v1991
        %v1993 = vand.u32 %v1992, 4294901760
        %1994 = vmatmul.mubr.f32.gmra.mrb[0].mxu0 %v1993
        %v1995 = vpop.f32.mrb[0].mxu0
        %v1996 = vadd.f32 %v1638, %v1995
        %v1997 = vpop.f32.mrb[0].mxu0
        %1998 = vmatprep.mubr.f32.mxu0 0.0
        %v1999 = vand.u32 %v551, 4294901760
        %v2000 = vsub.f32 %v551, %v1999
        %v2001 = vand.u32 %v2000, 4294901760
        %2002 = vmatmul.mubr.f32.gmra.mrb[0].mxu0 %v2001
        %v2003 = vpop.f32.mrb[0].mxu0
        %v2004 = vadd.f32 %v1645, %v2003
        %v2005 = vpop.f32.mrb[0].mxu0
        %2006 = vmatprep.mubr.f32.mxu0 0.0
        %v2007 = vand.u32 %v554, 4294901760
        %v2008 = vsub.f32 %v554, %v2007
        %v2009 = vand.u32 %v2008, 4294901760
        %2010 = vmatmul.mubr.f32.gmra.mrb[0].mxu0 %v2009
        %v2011 = vpop.f32.mrb[0].mxu0
        %v2012 = vadd.f32 %v1652, %v2011
        %v2013 = vpop.f32.mrb[0].mxu0
        %2014 = vmatprep.mubr.f32.mxu0 0.0
        %v2015 = vand.u32 %v557, 4294901760
        %v2016 = vsub.f32 %v557, %v2015
        %v2017 = vand.u32 %v2016, 4294901760
        %2018 = vmatmul.mubr.f32.gmra.mrb[0].mxu0 %v2017
        %v2019 = vpop.f32.mrb[0].mxu0
        %v2020 = vadd.f32 %v1659, %v2019
        %v2021 = vpop.f32.mrb[0].mxu0
        %2022 = vmatprep.mubr.f32.mxu0 0.0
        %v2023 = vand.u32 %v560, 4294901760
        %v2024 = vsub.f32 %v560, %v2023
        %v2025 = vand.u32 %v2024, 4294901760
        %2026 = vmatmul.mubr.f32.gmra.mrb[0].mxu0 %v2025
        %v2027 = vpop.f32.mrb[0].mxu0
        %v2028 = vadd.f32 %v1666, %v2027
        %v2029 = vpop.f32.mrb[0].mxu0
        %2030 = vmatprep.mubr.f32.mxu0 0.0
        %v2031 = vand.u32 %v563, 4294901760
        %v2032 = vsub.f32 %v563, %v2031
        %v2033 = vand.u32 %v2032, 4294901760
        %2034 = vmatmul.mubr.f32.gmra.mrb[0].mxu0 %v2033
        %v2035 = vpop.f32.mrb[0].mxu0
        %v2036 = vadd.f32 %v1673, %v2035
        %v2037 = vpop.f32.mrb[0].mxu0
        %2038 = vmatprep.mubr.f32.mxu0 0.0
        %v2039 = vand.u32 %v566, 4294901760
        %v2040 = vsub.f32 %v566, %v2039
        %v2041 = vand.u32 %v2040, 4294901760
        %2042 = vmatmul.mubr.f32.gmra.mrb[0].mxu0 %v2041
        %v2043 = vpop.f32.mrb[0].mxu0
        %v2044 = vadd.f32 %v1680, %v2043
        %v2045 = vpop.f32.mrb[0].mxu0
        %2046 = vdwg.mxu0
        %2047 = vmatprep.subr.mxu0 0.0
        %v2048 = vand.u32 %v448, 4294901760
        %v2049 = vsub.f32 %v448, %v2048
        %v2050 = vand.u32 %v2049, 4294901760
        %2051 = vmatpush1.msra.mxu0 %v2050
        %2052 = vmatprep.subr.mxu0 0.0
        %v2053 = vand.u32 %v449, 4294901760
        %v2054 = vsub.f32 %v449, %v2053
        %v2055 = vand.u32 %v2054, 4294901760
        %2056 = vmatpush1.msra.mxu0 %v2055
        %2057 = vmatprep.subr.mxu0 0.0
        %v2058 = vand.u32 %v450, 4294901760
        %v2059 = vsub.f32 %v450, %v2058
        %v2060 = vand.u32 %v2059, 4294901760
        %2061 = vmatpush1.msra.mxu0 %v2060
        %2062 = vmatprep.subr.mxu0 0.0
        %v2063 = vand.u32 %v451, 4294901760
        %v2064 = vsub.f32 %v451, %v2063
        %v2065 = vand.u32 %v2064, 4294901760
        %2066 = vmatpush1.msra.mxu0 %v2065
        %2067 = vmatprep.subr.mxu0 0.0
        %v2068 = vand.u32 %v452, 4294901760
        %v2069 = vsub.f32 %v452, %v2068
        %v2070 = vand.u32 %v2069, 4294901760
        %2071 = vmatpush1.msra.mxu0 %v2070
        %2072 = vmatprep.subr.mxu0 0.0
        %v2073 = vand.u32 %v453, 4294901760
        %v2074 = vsub.f32 %v453, %v2073
        %v2075 = vand.u32 %v2074, 4294901760
        %2076 = vmatpush1.msra.mxu0 %v2075
        %2077 = vmatprep.subr.mxu0 0.0
        %v2078 = vand.u32 %v454, 4294901760
        %v2079 = vsub.f32 %v454, %v2078
        %v2080 = vand.u32 %v2079, 4294901760
        %2081 = vmatpush1.msra.mxu0 %v2080
        %2082 = vmatprep.subr.mxu0 0.0
        %v2083 = vand.u32 %v455, 4294901760
        %v2084 = vsub.f32 %v455, %v2083
        %v2085 = vand.u32 %v2084, 4294901760
        %2086 = vmatpush1.msra.mxu0 %v2085
        %2087 = vmatprep.subr.mxu0 0.0
        %v2088 = vand.u32 %v456, 4294901760
        %v2089 = vsub.f32 %v456, %v2088
        %v2090 = vand.u32 %v2089, 4294901760
        %2091 = vmatpush1.msra.mxu0 %v2090
        %2092 = vmatprep.subr.mxu0 0.0
        %v2093 = vand.u32 %v457, 4294901760
        %v2094 = vsub.f32 %v457, %v2093
        %v2095 = vand.u32 %v2094, 4294901760
        %2096 = vmatpush1.msra.mxu0 %v2095
        %2097 = vmatprep.subr.mxu0 0.0
        %v2098 = vand.u32 %v570, 4294901760
        %v2099 = vsub.f32 %v570, %v2098
        %v2100 = vand.u32 %v2099, 4294901760
        %2101 = vmatpush1.msra.mxu0 %v2100
        %2102 = vmatprep.subr.mxu0 0.0
        %2103 = vmatpush1.msra.mxu0 0.0
        %2104 = vmatprep.subr.mxu0 0.0
        %2105 = vmatpush1.msra.mxu0 0.0
        %2106 = vmatprep.subr.mxu0 0.0
        %2107 = vmatpush1.msra.mxu0 0.0
        %2108 = vmatprep.subr.mxu0 0.0
        %2109 = vmatpush1.msra.mxu0 0.0
        %2110 = vmatprep.subr.mxu0 0.0
        %2111 = vmatpush1.msra.mxu0 0.0
        %2112 = vmatprep.subr.mxu0 0.0
        %2113 = vmatpush1.msra.mxu0 0.0
        %2114 = vmatprep.subr.mxu0 0.0
        %2115 = vmatpush1.msra.mxu0 0.0
        %2116 = vmatprep.subr.mxu0 0.0
        %2117 = vmatpush1.msra.mxu0 0.0
        %2118 = vmatprep.subr.mxu0 0.0
        %2119 = vmatpush1.msra.mxu0 0.0
        %2120 = vmatprep.subr.mxu0 0.0
        %2121 = vmatpush1.msra.mxu0 0.0
        %2122 = vmatprep.subr.mxu0 0.0
        %2123 = vmatpush1.msra.mxu0 0.0
        %2124 = vmatprep.subr.mxu0 0.0
        %2125 = vmatpush1.msra.mxu0 0.0
        %2126 = vmatprep.subr.mxu0 0.0
        %2127 = vmatpush1.msra.mxu0 0.0
        %2128 = vmatprep.subr.mxu0 0.0
        %2129 = vmatpush1.msra.mxu0 0.0
        %2130 = vmatprep.subr.mxu0 0.0
        %2131 = vmatpush1.msra.mxu0 0.0
        %2132 = vmatprep.subr.mxu0 0.0
        %2133 = vmatpush1.msra.mxu0 0.0
        %2134 = vmatprep.subr.mxu0 0.0
        %2135 = vmatpush1.msra.mxu0 0.0
        %2136 = vmatprep.subr.mxu0 0.0
        %2137 = vmatpush1.msra.mxu0 0.0
        %2138 = vmatprep.subr.mxu0 0.0
        %2139 = vmatpush1.msra.mxu0 0.0
        %2140 = vmatprep.subr.mxu0 0.0
        %2141 = vmatpush1.msra.mxu0 0.0
        %2142 = vmatprep.subr.mxu0 0.0
        %2143 = vmatpush1.msra.mxu0 0.0
        %2144 = vmatprep.mubr.f32.mxu0 0.0
        %v2145 = vand.u32 %v461, 4294901760
        %2146 = vmatmul.mubr.f32.gmra.mrb[0].mxu0 %v2145
        %v2147 = vpop.f32.mrb[0].mxu0
        %v2148 = vadd.f32 %v1764, %v2147
        %v2149 = vpop.f32.mrb[0].mxu0
        %2150 = vmatprep.mubr.f32.mxu0 0.0
        %v2151 = vand.u32 %v464, 4294901760
        %2152 = vmatmul.mubr.f32.gmra.mrb[0].mxu0 %v2151
        %v2153 = vpop.f32.mrb[0].mxu0
        %v2154 = vadd.f32 %v1772, %v2153
        %v2155 = vpop.f32.mrb[0].mxu0
        %2156 = vmatprep.mubr.f32.mxu0 0.0
        %v2157 = vand.u32 %v467, 4294901760
        %2158 = vmatmul.mubr.f32.gmra.mrb[0].mxu0 %v2157
        %v2159 = vpop.f32.mrb[0].mxu0
        %v2160 = vadd.f32 %v1780, %v2159
        %v2161 = vpop.f32.mrb[0].mxu0
        %2162 = vmatprep.mubr.f32.mxu0 0.0
        %v2163 = vand.u32 %v470, 4294901760
        %2164 = vmatmul.mubr.f32.gmra.mrb[0].mxu0 %v2163
        %v2165 = vpop.f32.mrb[0].mxu0
        %v2166 = vadd.f32 %v1788, %v2165
        %v2167 = vpop.f32.mrb[0].mxu0
        %2168 = vmatprep.mubr.f32.mxu0 0.0
        %v2169 = vand.u32 %v473, 4294901760
        %2170 = vmatmul.mubr.f32.gmra.mrb[0].mxu0 %v2169
        %v2171 = vpop.f32.mrb[0].mxu0
        %v2172 = vadd.f32 %v1796, %v2171
        %v2173 = vpop.f32.mrb[0].mxu0
        %2174 = vmatprep.mubr.f32.mxu0 0.0
        %v2175 = vand.u32 %v476, 4294901760
        %2176 = vmatmul.mubr.f32.gmra.mrb[0].mxu0 %v2175
        %v2177 = vpop.f32.mrb[0].mxu0
        %v2178 = vadd.f32 %v1804, %v2177
        %v2179 = vpop.f32.mrb[0].mxu0
        %2180 = vmatprep.mubr.f32.mxu0 0.0
        %v2181 = vand.u32 %v479, 4294901760
        %2182 = vmatmul.mubr.f32.gmra.mrb[0].mxu0 %v2181
        %v2183 = vpop.f32.mrb[0].mxu0
        %v2184 = vadd.f32 %v1812, %v2183
        %v2185 = vpop.f32.mrb[0].mxu0
        %2186 = vmatprep.mubr.f32.mxu0 0.0
        %v2187 = vand.u32 %v482, 4294901760
        %2188 = vmatmul.mubr.f32.gmra.mrb[0].mxu0 %v2187
        %v2189 = vpop.f32.mrb[0].mxu0
        %v2190 = vadd.f32 %v1820, %v2189
        %v2191 = vpop.f32.mrb[0].mxu0
        %2192 = vmatprep.mubr.f32.mxu0 0.0
        %v2193 = vand.u32 %v485, 4294901760
        %2194 = vmatmul.mubr.f32.gmra.mrb[0].mxu0 %v2193
        %v2195 = vpop.f32.mrb[0].mxu0
        %v2196 = vadd.f32 %v1828, %v2195
        %v2197 = vpop.f32.mrb[0].mxu0
        %2198 = vmatprep.mubr.f32.mxu0 0.0
        %v2199 = vand.u32 %v488, 4294901760
        %2200 = vmatmul.mubr.f32.gmra.mrb[0].mxu0 %v2199
        %v2201 = vpop.f32.mrb[0].mxu0
        %v2202 = vadd.f32 %v1836, %v2201
        %v2203 = vpop.f32.mrb[0].mxu0
        %2204 = vmatprep.mubr.f32.mxu0 0.0
        %v2205 = vand.u32 %v491, 4294901760
        %2206 = vmatmul.mubr.f32.gmra.mrb[0].mxu0 %v2205
        %v2207 = vpop.f32.mrb[0].mxu0
        %v2208 = vadd.f32 %v1844, %v2207
        %v2209 = vpop.f32.mrb[0].mxu0
        %2210 = vmatprep.mubr.f32.mxu0 0.0
        %v2211 = vand.u32 %v494, 4294901760
        %2212 = vmatmul.mubr.f32.gmra.mrb[0].mxu0 %v2211
        %v2213 = vpop.f32.mrb[0].mxu0
        %v2214 = vadd.f32 %v1852, %v2213
        %v2215 = vpop.f32.mrb[0].mxu0
        %2216 = vmatprep.mubr.f32.mxu0 0.0
        %v2217 = vand.u32 %v497, 4294901760
        %2218 = vmatmul.mubr.f32.gmra.mrb[0].mxu0 %v2217
        %v2219 = vpop.f32.mrb[0].mxu0
        %v2220 = vadd.f32 %v1860, %v2219
        %v2221 = vpop.f32.mrb[0].mxu0
        %2222 = vmatprep.mubr.f32.mxu0 0.0
        %v2223 = vand.u32 %v500, 4294901760
        %2224 = vmatmul.mubr.f32.gmra.mrb[0].mxu0 %v2223
        %v2225 = vpop.f32.mrb[0].mxu0
        %v2226 = vadd.f32 %v1868, %v2225
        %v2227 = vpop.f32.mrb[0].mxu0
        %2228 = vmatprep.mubr.f32.mxu0 0.0
        %v2229 = vand.u32 %v503, 4294901760
        %2230 = vmatmul.mubr.f32.gmra.mrb[0].mxu0 %v2229
        %v2231 = vpop.f32.mrb[0].mxu0
        %v2232 = vadd.f32 %v1876, %v2231
        %v2233 = vpop.f32.mrb[0].mxu0
        %2234 = vmatprep.mubr.f32.mxu0 0.0
        %v2235 = vand.u32 %v506, 4294901760
        %2236 = vmatmul.mubr.f32.gmra.mrb[0].mxu0 %v2235
        %v2237 = vpop.f32.mrb[0].mxu0
        %v2238 = vadd.f32 %v1884, %v2237
        %v2239 = vpop.f32.mrb[0].mxu0
        %2240 = vmatprep.mubr.f32.mxu0 0.0
        %v2241 = vand.u32 %v509, 4294901760
        %2242 = vmatmul.mubr.f32.gmra.mrb[0].mxu0 %v2241
        %v2243 = vpop.f32.mrb[0].mxu0
        %v2244 = vadd.f32 %v1892, %v2243
        %v2245 = vpop.f32.mrb[0].mxu0
        %2246 = vmatprep.mubr.f32.mxu0 0.0
        %v2247 = vand.u32 %v512, 4294901760
        %2248 = vmatmul.mubr.f32.gmra.mrb[0].mxu0 %v2247
        %v2249 = vpop.f32.mrb[0].mxu0
        %v2250 = vadd.f32 %v1900, %v2249
        %v2251 = vpop.f32.mrb[0].mxu0
        %2252 = vmatprep.mubr.f32.mxu0 0.0
        %v2253 = vand.u32 %v515, 4294901760
        %2254 = vmatmul.mubr.f32.gmra.mrb[0].mxu0 %v2253
        %v2255 = vpop.f32.mrb[0].mxu0
        %v2256 = vadd.f32 %v1908, %v2255
        %v2257 = vpop.f32.mrb[0].mxu0
        %2258 = vmatprep.mubr.f32.mxu0 0.0
        %v2259 = vand.u32 %v518, 4294901760
        %2260 = vmatmul.mubr.f32.gmra.mrb[0].mxu0 %v2259
        %v2261 = vpop.f32.mrb[0].mxu0
        %v2262 = vadd.f32 %v1916, %v2261
        %v2263 = vpop.f32.mrb[0].mxu0
        %2264 = vmatprep.mubr.f32.mxu0 0.0
        %v2265 = vand.u32 %v521, 4294901760
        %2266 = vmatmul.mubr.f32.gmra.mrb[0].mxu0 %v2265
        %v2267 = vpop.f32.mrb[0].mxu0
        %v2268 = vadd.f32 %v1924, %v2267
        %v2269 = vpop.f32.mrb[0].mxu0
        %2270 = vmatprep.mubr.f32.mxu0 0.0
        %v2271 = vand.u32 %v524, 4294901760
        %2272 = vmatmul.mubr.f32.gmra.mrb[0].mxu0 %v2271
        %v2273 = vpop.f32.mrb[0].mxu0
        %v2274 = vadd.f32 %v1932, %v2273
        %v2275 = vpop.f32.mrb[0].mxu0
        %2276 = vmatprep.mubr.f32.mxu0 0.0
        %v2277 = vand.u32 %v527, 4294901760
        %2278 = vmatmul.mubr.f32.gmra.mrb[0].mxu0 %v2277
        %v2279 = vpop.f32.mrb[0].mxu0
        %v2280 = vadd.f32 %v1940, %v2279
        %v2281 = vpop.f32.mrb[0].mxu0
        %2282 = vmatprep.mubr.f32.mxu0 0.0
        %v2283 = vand.u32 %v530, 4294901760
        %2284 = vmatmul.mubr.f32.gmra.mrb[0].mxu0 %v2283
        %v2285 = vpop.f32.mrb[0].mxu0
        %v2286 = vadd.f32 %v1948, %v2285
        %v2287 = vpop.f32.mrb[0].mxu0
        %2288 = vmatprep.mubr.f32.mxu0 0.0
        %v2289 = vand.u32 %v533, 4294901760
        %2290 = vmatmul.mubr.f32.gmra.mrb[0].mxu0 %v2289
        %v2291 = vpop.f32.mrb[0].mxu0
        %v2292 = vadd.f32 %v1956, %v2291
        %v2293 = vpop.f32.mrb[0].mxu0
        %2294 = vmatprep.mubr.f32.mxu0 0.0
        %v2295 = vand.u32 %v536, 4294901760
        %2296 = vmatmul.mubr.f32.gmra.mrb[0].mxu0 %v2295
        %v2297 = vpop.f32.mrb[0].mxu0
        %v2298 = vadd.f32 %v1964, %v2297
        %v2299 = vpop.f32.mrb[0].mxu0
        %2300 = vmatprep.mubr.f32.mxu0 0.0
        %v2301 = vand.u32 %v539, 4294901760
        %2302 = vmatmul.mubr.f32.gmra.mrb[0].mxu0 %v2301
        %v2303 = vpop.f32.mrb[0].mxu0
        %v2304 = vadd.f32 %v1972, %v2303
        %v2305 = vpop.f32.mrb[0].mxu0
        %2306 = vmatprep.mubr.f32.mxu0 0.0
        %v2307 = vand.u32 %v542, 4294901760
        %2308 = vmatmul.mubr.f32.gmra.mrb[0].mxu0 %v2307
        %v2309 = vpop.f32.mrb[0].mxu0
        %v2310 = vadd.f32 %v1980, %v2309
        %v2311 = vpop.f32.mrb[0].mxu0
        %2312 = vmatprep.mubr.f32.mxu0 0.0
        %v2313 = vand.u32 %v545, 4294901760
        %2314 = vmatmul.mubr.f32.gmra.mrb[0].mxu0 %v2313
        %v2315 = vpop.f32.mrb[0].mxu0
        %v2316 = vadd.f32 %v1988, %v2315
        %v2317 = vpop.f32.mrb[0].mxu0
        %2318 = vmatprep.mubr.f32.mxu0 0.0
        %v2319 = vand.u32 %v548, 4294901760
        %2320 = vmatmul.mubr.f32.gmra.mrb[0].mxu0 %v2319
        %v2321 = vpop.f32.mrb[0].mxu0
        %v2322 = vadd.f32 %v1996, %v2321
        %v2323 = vpop.f32.mrb[0].mxu0
        %2324 = vmatprep.mubr.f32.mxu0 0.0
        %v2325 = vand.u32 %v551, 4294901760
        %2326 = vmatmul.mubr.f32.gmra.mrb[0].mxu0 %v2325
        %v2327 = vpop.f32.mrb[0].mxu0
        %v2328 = vadd.f32 %v2004, %v2327
        %v2329 = vpop.f32.mrb[0].mxu0
        %2330 = vmatprep.mubr.f32.mxu0 0.0
        %v2331 = vand.u32 %v554, 4294901760
        %2332 = vmatmul.mubr.f32.gmra.mrb[0].mxu0 %v2331
        %v2333 = vpop.f32.mrb[0].mxu0
        %v2334 = vadd.f32 %v2012, %v2333
        %v2335 = vpop.f32.mrb[0].mxu0
        %2336 = vmatprep.mubr.f32.mxu0 0.0
        %v2337 = vand.u32 %v557, 4294901760
        %2338 = vmatmul.mubr.f32.gmra.mrb[0].mxu0 %v2337
        %v2339 = vpop.f32.mrb[0].mxu0
        %v2340 = vadd.f32 %v2020, %v2339
        %v2341 = vpop.f32.mrb[0].mxu0
        %2342 = vmatprep.mubr.f32.mxu0 0.0
        %v2343 = vand.u32 %v560, 4294901760
        %2344 = vmatmul.mubr.f32.gmra.mrb[0].mxu0 %v2343
        %v2345 = vpop.f32.mrb[0].mxu0
        %v2346 = vadd.f32 %v2028, %v2345
        %v2347 = vpop.f32.mrb[0].mxu0
        %2348 = vmatprep.mubr.f32.mxu0 0.0
        %v2349 = vand.u32 %v563, 4294901760
        %2350 = vmatmul.mubr.f32.gmra.mrb[0].mxu0 %v2349
        %v2351 = vpop.f32.mrb[0].mxu0
        %v2352 = vadd.f32 %v2036, %v2351
        %v2353 = vpop.f32.mrb[0].mxu0
        %2354 = vmatprep.mubr.f32.mxu0 0.0
        %v2355 = vand.u32 %v566, 4294901760
        %2356 = vmatmul.mubr.f32.gmra.mrb[0].mxu0 %v2355
        %v2357 = vpop.f32.mrb[0].mxu0
        %v2358 = vadd.f32 %v2044, %v2357
        %v2359 = vpop.f32.mrb[0].mxu0
        %2360 = vdwg.mxu0
        %2361 = vmatprep.subr.mxu0 0.0
        %v2362 = vand.u32 %v448, 4294901760
        %2363 = vmatpush1.msra.mxu0 %v2362
        %2364 = vmatprep.subr.mxu0 0.0
        %v2365 = vand.u32 %v449, 4294901760
        %2366 = vmatpush1.msra.mxu0 %v2365
        %2367 = vmatprep.subr.mxu0 0.0
        %v2368 = vand.u32 %v450, 4294901760
        %2369 = vmatpush1.msra.mxu0 %v2368
        %2370 = vmatprep.subr.mxu0 0.0
        %v2371 = vand.u32 %v451, 4294901760
        %2372 = vmatpush1.msra.mxu0 %v2371
        %2373 = vmatprep.subr.mxu0 0.0
        %v2374 = vand.u32 %v452, 4294901760
        %2375 = vmatpush1.msra.mxu0 %v2374
        %2376 = vmatprep.subr.mxu0 0.0
        %v2377 = vand.u32 %v453, 4294901760
        %2378 = vmatpush1.msra.mxu0 %v2377
        %2379 = vmatprep.subr.mxu0 0.0
        %v2380 = vand.u32 %v454, 4294901760
        %2381 = vmatpush1.msra.mxu0 %v2380
        %2382 = vmatprep.subr.mxu0 0.0
        %v2383 = vand.u32 %v455, 4294901760
        %2384 = vmatpush1.msra.mxu0 %v2383
        %2385 = vmatprep.subr.mxu0 0.0
        %v2386 = vand.u32 %v456, 4294901760
        %2387 = vmatpush1.msra.mxu0 %v2386
        %2388 = vmatprep.subr.mxu0 0.0
        %v2389 = vand.u32 %v457, 4294901760
        %2390 = vmatpush1.msra.mxu0 %v2389
        %2391 = vmatprep.subr.mxu0 0.0
        %v2392 = vand.u32 %v570, 4294901760
        %2393 = vmatpush1.msra.mxu0 %v2392
        %2394 = vmatprep.subr.mxu0 0.0
        %2395 = vmatpush1.msra.mxu0 0.0
        %2396 = vmatprep.subr.mxu0 0.0
        %2397 = vmatpush1.msra.mxu0 0.0
        %2398 = vmatprep.subr.mxu0 0.0
        %2399 = vmatpush1.msra.mxu0 0.0
        %2400 = vmatprep.subr.mxu0 0.0
        %2401 = vmatpush1.msra.mxu0 0.0
        %2402 = vmatprep.subr.mxu0 0.0
        %2403 = vmatpush1.msra.mxu0 0.0
        %2404 = vmatprep.subr.mxu0 0.0
        %2405 = vmatpush1.msra.mxu0 0.0
        %2406 = vmatprep.subr.mxu0 0.0
        %2407 = vmatpush1.msra.mxu0 0.0
        %2408 = vmatprep.subr.mxu0 0.0
        %2409 = vmatpush1.msra.mxu0 0.0
        %2410 = vmatprep.subr.mxu0 0.0
        %2411 = vmatpush1.msra.mxu0 0.0
        %2412 = vmatprep.subr.mxu0 0.0
        %2413 = vmatpush1.msra.mxu0 0.0
        %2414 = vmatprep.subr.mxu0 0.0
        %2415 = vmatpush1.msra.mxu0 0.0
        %2416 = vmatprep.subr.mxu0 0.0
        %2417 = vmatpush1.msra.mxu0 0.0
        %2418 = vmatprep.subr.mxu0 0.0
        %2419 = vmatpush1.msra.mxu0 0.0
        %2420 = vmatprep.subr.mxu0 0.0
        %2421 = vmatpush1.msra.mxu0 0.0
        %2422 = vmatprep.subr.mxu0 0.0
        %2423 = vmatpush1.msra.mxu0 0.0
        %2424 = vmatprep.subr.mxu0 0.0
        %2425 = vmatpush1.msra.mxu0 0.0
        %2426 = vmatprep.subr.mxu0 0.0
        %2427 = vmatpush1.msra.mxu0 0.0
        %2428 = vmatprep.subr.mxu0 0.0
        %2429 = vmatpush1.msra.mxu0 0.0
        %2430 = vmatprep.subr.mxu0 0.0
        %2431 = vmatpush1.msra.mxu0 0.0
        %2432 = vmatprep.subr.mxu0 0.0
        %2433 = vmatpush1.msra.mxu0 0.0
        %2434 = vmatprep.subr.mxu0 0.0
        %2435 = vmatpush1.msra.mxu0 0.0
        %2436 = vmatprep.mubr.f32.mxu0 0.0
        %v2437 = vand.u32 %v461, 4294901760
        %2438 = vmatmul.mubr.f32.gmra.mrb[0].mxu0 %v2437
        %v2439 = vpop.f32.mrb[0].mxu0
        %v2440 = vadd.f32 %v2148, %v2439
        %v2441 = vpop.f32.mrb[0].mxu0
        %2442 = vmatprep.mubr.f32.mxu0 0.0
        %v2443 = vand.u32 %v464, 4294901760
        %2444 = vmatmul.mubr.f32.gmra.mrb[0].mxu0 %v2443
        %v2445 = vpop.f32.mrb[0].mxu0
        %v2446 = vadd.f32 %v2154, %v2445
        %v2447 = vpop.f32.mrb[0].mxu0
        %2448 = vmatprep.mubr.f32.mxu0 0.0
        %v2449 = vand.u32 %v467, 4294901760
        %2450 = vmatmul.mubr.f32.gmra.mrb[0].mxu0 %v2449
        %v2451 = vpop.f32.mrb[0].mxu0
        %v2452 = vadd.f32 %v2160, %v2451
        %v2453 = vpop.f32.mrb[0].mxu0
        %2454 = vmatprep.mubr.f32.mxu0 0.0
        %v2455 = vand.u32 %v470, 4294901760
        %2456 = vmatmul.mubr.f32.gmra.mrb[0].mxu0 %v2455
        %v2457 = vpop.f32.mrb[0].mxu0
        %v2458 = vadd.f32 %v2166, %v2457
        %v2459 = vpop.f32.mrb[0].mxu0
        %2460 = vmatprep.mubr.f32.mxu0 0.0
        %v2461 = vand.u32 %v473, 4294901760
        %2462 = vmatmul.mubr.f32.gmra.mrb[0].mxu0 %v2461
        %v2463 = vpop.f32.mrb[0].mxu0
        %v2464 = vadd.f32 %v2172, %v2463
        %v2465 = vpop.f32.mrb[0].mxu0
        %2466 = vmatprep.mubr.f32.mxu0 0.0
        %v2467 = vand.u32 %v476, 4294901760
        %2468 = vmatmul.mubr.f32.gmra.mrb[0].mxu0 %v2467
        %v2469 = vpop.f32.mrb[0].mxu0
        %v2470 = vadd.f32 %v2178, %v2469
        %v2471 = vpop.f32.mrb[0].mxu0
        %2472 = vmatprep.mubr.f32.mxu0 0.0
        %v2473 = vand.u32 %v479, 4294901760
        %2474 = vmatmul.mubr.f32.gmra.mrb[0].mxu0 %v2473
        %v2475 = vpop.f32.mrb[0].mxu0
        %v2476 = vadd.f32 %v2184, %v2475
        %v2477 = vpop.f32.mrb[0].mxu0
        %2478 = vmatprep.mubr.f32.mxu0 0.0
        %v2479 = vand.u32 %v482, 4294901760
        %2480 = vmatmul.mubr.f32.gmra.mrb[0].mxu0 %v2479
        %v2481 = vpop.f32.mrb[0].mxu0
        %v2482 = vadd.f32 %v2190, %v2481
        %v2483 = vpop.f32.mrb[0].mxu0
        %2484 = vmatprep.mubr.f32.mxu0 0.0
        %v2485 = vand.u32 %v485, 4294901760
        %2486 = vmatmul.mubr.f32.gmra.mrb[0].mxu0 %v2485
        %v2487 = vpop.f32.mrb[0].mxu0
        %v2488 = vadd.f32 %v2196, %v2487
        %v2489 = vpop.f32.mrb[0].mxu0
        %2490 = vmatprep.mubr.f32.mxu0 0.0
        %v2491 = vand.u32 %v488, 4294901760
        %2492 = vmatmul.mubr.f32.gmra.mrb[0].mxu0 %v2491
        %v2493 = vpop.f32.mrb[0].mxu0
        %v2494 = vadd.f32 %v2202, %v2493
        %v2495 = vpop.f32.mrb[0].mxu0
        %2496 = vmatprep.mubr.f32.mxu0 0.0
        %v2497 = vand.u32 %v491, 4294901760
        %2498 = vmatmul.mubr.f32.gmra.mrb[0].mxu0 %v2497
        %v2499 = vpop.f32.mrb[0].mxu0
        %v2500 = vadd.f32 %v2208, %v2499
        %v2501 = vpop.f32.mrb[0].mxu0
        %2502 = vmatprep.mubr.f32.mxu0 0.0
        %v2503 = vand.u32 %v494, 4294901760
        %2504 = vmatmul.mubr.f32.gmra.mrb[0].mxu0 %v2503
        %v2505 = vpop.f32.mrb[0].mxu0
        %v2506 = vadd.f32 %v2214, %v2505
        %v2507 = vpop.f32.mrb[0].mxu0
        %2508 = vmatprep.mubr.f32.mxu0 0.0
        %v2509 = vand.u32 %v497, 4294901760
        %2510 = vmatmul.mubr.f32.gmra.mrb[0].mxu0 %v2509
        %v2511 = vpop.f32.mrb[0].mxu0
        %v2512 = vadd.f32 %v2220, %v2511
        %v2513 = vpop.f32.mrb[0].mxu0
        %2514 = vmatprep.mubr.f32.mxu0 0.0
        %v2515 = vand.u32 %v500, 4294901760
        %2516 = vmatmul.mubr.f32.gmra.mrb[0].mxu0 %v2515
        %v2517 = vpop.f32.mrb[0].mxu0
        %v2518 = vadd.f32 %v2226, %v2517
        %v2519 = vpop.f32.mrb[0].mxu0
        %2520 = vmatprep.mubr.f32.mxu0 0.0
        %v2521 = vand.u32 %v503, 4294901760
        %2522 = vmatmul.mubr.f32.gmra.mrb[0].mxu0 %v2521
        %v2523 = vpop.f32.mrb[0].mxu0
        %v2524 = vadd.f32 %v2232, %v2523
        %v2525 = vpop.f32.mrb[0].mxu0
        %2526 = vmatprep.mubr.f32.mxu0 0.0
        %v2527 = vand.u32 %v506, 4294901760
        %2528 = vmatmul.mubr.f32.gmra.mrb[0].mxu0 %v2527
        %v2529 = vpop.f32.mrb[0].mxu0
        %v2530 = vadd.f32 %v2238, %v2529
        %v2531 = vpop.f32.mrb[0].mxu0
        %2532 = vmatprep.mubr.f32.mxu0 0.0
        %v2533 = vand.u32 %v509, 4294901760
        %2534 = vmatmul.mubr.f32.gmra.mrb[0].mxu0 %v2533
        %v2535 = vpop.f32.mrb[0].mxu0
        %v2536 = vadd.f32 %v2244, %v2535
        %v2537 = vpop.f32.mrb[0].mxu0
        %2538 = vmatprep.mubr.f32.mxu0 0.0
        %v2539 = vand.u32 %v512, 4294901760
        %2540 = vmatmul.mubr.f32.gmra.mrb[0].mxu0 %v2539
        %v2541 = vpop.f32.mrb[0].mxu0
        %v2542 = vadd.f32 %v2250, %v2541
        %v2543 = vpop.f32.mrb[0].mxu0
        %2544 = vmatprep.mubr.f32.mxu0 0.0
        %v2545 = vand.u32 %v515, 4294901760
        %2546 = vmatmul.mubr.f32.gmra.mrb[0].mxu0 %v2545
        %v2547 = vpop.f32.mrb[0].mxu0
        %v2548 = vadd.f32 %v2256, %v2547
        %v2549 = vpop.f32.mrb[0].mxu0
        %2550 = vmatprep.mubr.f32.mxu0 0.0
        %v2551 = vand.u32 %v518, 4294901760
        %2552 = vmatmul.mubr.f32.gmra.mrb[0].mxu0 %v2551
        %v2553 = vpop.f32.mrb[0].mxu0
        %v2554 = vadd.f32 %v2262, %v2553
        %v2555 = vpop.f32.mrb[0].mxu0
        %2556 = vmatprep.mubr.f32.mxu0 0.0
        %v2557 = vand.u32 %v521, 4294901760
        %2558 = vmatmul.mubr.f32.gmra.mrb[0].mxu0 %v2557
        %v2559 = vpop.f32.mrb[0].mxu0
        %v2560 = vadd.f32 %v2268, %v2559
        %v2561 = vpop.f32.mrb[0].mxu0
        %2562 = vmatprep.mubr.f32.mxu0 0.0
        %v2563 = vand.u32 %v524, 4294901760
        %2564 = vmatmul.mubr.f32.gmra.mrb[0].mxu0 %v2563
        %v2565 = vpop.f32.mrb[0].mxu0
        %v2566 = vadd.f32 %v2274, %v2565
        %v2567 = vpop.f32.mrb[0].mxu0
        %2568 = vmatprep.mubr.f32.mxu0 0.0
        %v2569 = vand.u32 %v527, 4294901760
        %2570 = vmatmul.mubr.f32.gmra.mrb[0].mxu0 %v2569
        %v2571 = vpop.f32.mrb[0].mxu0
        %v2572 = vadd.f32 %v2280, %v2571
        %v2573 = vpop.f32.mrb[0].mxu0
        %2574 = vmatprep.mubr.f32.mxu0 0.0
        %v2575 = vand.u32 %v530, 4294901760
        %2576 = vmatmul.mubr.f32.gmra.mrb[0].mxu0 %v2575
        %v2577 = vpop.f32.mrb[0].mxu0
        %v2578 = vadd.f32 %v2286, %v2577
        %v2579 = vpop.f32.mrb[0].mxu0
        %2580 = vmatprep.mubr.f32.mxu0 0.0
        %v2581 = vand.u32 %v533, 4294901760
        %2582 = vmatmul.mubr.f32.gmra.mrb[0].mxu0 %v2581
        %v2583 = vpop.f32.mrb[0].mxu0
        %v2584 = vadd.f32 %v2292, %v2583
        %v2585 = vpop.f32.mrb[0].mxu0
        %2586 = vmatprep.mubr.f32.mxu0 0.0
        %v2587 = vand.u32 %v536, 4294901760
        %2588 = vmatmul.mubr.f32.gmra.mrb[0].mxu0 %v2587
        %v2589 = vpop.f32.mrb[0].mxu0
        %v2590 = vadd.f32 %v2298, %v2589
        %v2591 = vpop.f32.mrb[0].mxu0
        %2592 = vmatprep.mubr.f32.mxu0 0.0
        %v2593 = vand.u32 %v539, 4294901760
        %2594 = vmatmul.mubr.f32.gmra.mrb[0].mxu0 %v2593
        %v2595 = vpop.f32.mrb[0].mxu0
        %v2596 = vadd.f32 %v2304, %v2595
        %v2597 = vpop.f32.mrb[0].mxu0
        %2598 = vmatprep.mubr.f32.mxu0 0.0
        %v2599 = vand.u32 %v542, 4294901760
        %2600 = vmatmul.mubr.f32.gmra.mrb[0].mxu0 %v2599
        %v2601 = vpop.f32.mrb[0].mxu0
        %v2602 = vadd.f32 %v2310, %v2601
        %v2603 = vpop.f32.mrb[0].mxu0
        %2604 = vmatprep.mubr.f32.mxu0 0.0
        %v2605 = vand.u32 %v545, 4294901760
        %2606 = vmatmul.mubr.f32.gmra.mrb[0].mxu0 %v2605
        %v2607 = vpop.f32.mrb[0].mxu0
        %v2608 = vadd.f32 %v2316, %v2607
        %v2609 = vpop.f32.mrb[0].mxu0
        %2610 = vmatprep.mubr.f32.mxu0 0.0
        %v2611 = vand.u32 %v548, 4294901760
        %2612 = vmatmul.mubr.f32.gmra.mrb[0].mxu0 %v2611
        %v2613 = vpop.f32.mrb[0].mxu0
        %v2614 = vadd.f32 %v2322, %v2613
        %v2615 = vpop.f32.mrb[0].mxu0
        %2616 = vmatprep.mubr.f32.mxu0 0.0
        %v2617 = vand.u32 %v551, 4294901760
        %2618 = vmatmul.mubr.f32.gmra.mrb[0].mxu0 %v2617
        %v2619 = vpop.f32.mrb[0].mxu0
        %v2620 = vadd.f32 %v2328, %v2619
        %v2621 = vpop.f32.mrb[0].mxu0
        %2622 = vmatprep.mubr.f32.mxu0 0.0
        %v2623 = vand.u32 %v554, 4294901760
        %2624 = vmatmul.mubr.f32.gmra.mrb[0].mxu0 %v2623
        %v2625 = vpop.f32.mrb[0].mxu0
        %v2626 = vadd.f32 %v2334, %v2625
        %v2627 = vpop.f32.mrb[0].mxu0
        %2628 = vmatprep.mubr.f32.mxu0 0.0
        %v2629 = vand.u32 %v557, 4294901760
        %2630 = vmatmul.mubr.f32.gmra.mrb[0].mxu0 %v2629
        %v2631 = vpop.f32.mrb[0].mxu0
        %v2632 = vadd.f32 %v2340, %v2631
        %v2633 = vpop.f32.mrb[0].mxu0
        %2634 = vmatprep.mubr.f32.mxu0 0.0
        %v2635 = vand.u32 %v560, 4294901760
        %2636 = vmatmul.mubr.f32.gmra.mrb[0].mxu0 %v2635
        %v2637 = vpop.f32.mrb[0].mxu0
        %v2638 = vadd.f32 %v2346, %v2637
        %v2639 = vpop.f32.mrb[0].mxu0
        %2640 = vmatprep.mubr.f32.mxu0 0.0
        %v2641 = vand.u32 %v563, 4294901760
        %2642 = vmatmul.mubr.f32.gmra.mrb[0].mxu0 %v2641
        %v2643 = vpop.f32.mrb[0].mxu0
        %v2644 = vadd.f32 %v2352, %v2643
        %v2645 = vpop.f32.mrb[0].mxu0
        %2646 = vmatprep.mubr.f32.mxu0 0.0
        %v2647 = vand.u32 %v566, 4294901760
        %2648 = vmatmul.mubr.f32.gmra.mrb[0].mxu0 %v2647
        %v2649 = vpop.f32.mrb[0].mxu0
        %v2650 = vadd.f32 %v2358, %v2649
        %v2651 = vpop.f32.mrb[0].mxu0
        %2652 = vdwg.mxu0
        %vm2653 = vcmask 261120
        %2654 = vst.msk [vmem:[%s180] sm:$0xff] %vm2653, %v2440
        %2655 = vst.msk [vmem:[%s180 + $0x18] sm:$0xff] %vm2653, %v2446
        %2656 = vst.msk [vmem:[%s180 + $0x30] sm:$0xff] %vm2653, %v2452
        %2657 = vst.msk [vmem:[%s180 + $0x48] sm:$0xff] %vm2653, %v2458
        %2662 = vrot.lane.b32.xlu0 %v2464, 32
        %v2663 = vpop.permute.xlu0 %2662
        %2664 = vrot.lane.b32.xlu0 %v2470, 32
        %v2665 = vpop.permute.xlu0 %2664
        %2666 = vrot.lane.b32.xlu0 %v2476, 32
        %v2667 = vpop.permute.xlu0 %2666
        %2668 = vrot.lane.b32.xlu0 %v2482, 32
        %v2669 = vpop.permute.xlu0 %2668
        %vm2674 = vcmask 523520
        %2675 = vst.msk [vmem:[%s180] sm:$0xff] %vm2674, %v2663
        %2676 = vst.msk [vmem:[%s180 + $0x18] sm:$0xff] %vm2674, %v2665
        %2677 = vst.msk [vmem:[%s180 + $0x30] sm:$0xff] %vm2674, %v2667
        %2678 = vst.msk [vmem:[%s180 + $0x48] sm:$0xff] %vm2674, %v2669
        %2683 = vrot.lane.b32.xlu0 %v2488, 64
        %v2684 = vpop.permute.xlu0 %2683
        %2685 = vrot.lane.b32.xlu0 %v2494, 64
        %v2686 = vpop.permute.xlu0 %2685
        %2687 = vrot.lane.b32.xlu0 %v2500, 64
        %v2688 = vpop.permute.xlu0 %2687
        %2689 = vrot.lane.b32.xlu0 %v2506, 64
        %v2690 = vpop.permute.xlu0 %2689
        %vm2695 = vcmask 785920
        %2696 = vst.msk [vmem:[%s180] sm:$0xff] %vm2695, %v2684
        %2697 = vst.msk [vmem:[%s180 + $0x18] sm:$0xff] %vm2695, %v2686
        %2698 = vst.msk [vmem:[%s180 + $0x30] sm:$0xff] %vm2695, %v2688
        %2699 = vst.msk [vmem:[%s180 + $0x48] sm:$0xff] %vm2695, %v2690
        %2704 = vrot.lane.b32.xlu0 %v2512, 96
        %v2705 = vpop.permute.xlu0 %2704
        %2706 = vrot.lane.b32.xlu0 %v2518, 96
        %v2707 = vpop.permute.xlu0 %2706
        %2708 = vrot.lane.b32.xlu0 %v2524, 96
        %v2709 = vpop.permute.xlu0 %2708
        %2710 = vrot.lane.b32.xlu0 %v2530, 96
        %v2711 = vpop.permute.xlu0 %2710
        %vm2716 = vcmask 1048320
        %2717 = vst.msk [vmem:[%s180] sm:$0xff] %vm2716, %v2705
        %2718 = vst.msk [vmem:[%s180 + $0x18] sm:$0xff] %vm2716, %v2707
        %2719 = vst.msk [vmem:[%s180 + $0x30] sm:$0xff] %vm2716, %v2709
        %2720 = vst.msk [vmem:[%s180 + $0x48] sm:$0xff] %vm2716, %v2711
        %2721 = vst.msk [vmem:[%s180 + $0x8] sm:$0xff] %vm2653, %v2536
        %2722 = vst.msk [vmem:[%s180 + $0x20] sm:$0xff] %vm2653, %v2542
        %2723 = vst.msk [vmem:[%s180 + $0x38] sm:$0xff] %vm2653, %v2548
        %2724 = vst.msk [vmem:[%s180 + $0x50] sm:$0xff] %vm2653, %v2554
        %2729 = vrot.lane.b32.xlu0 %v2560, 32
        %v2730 = vpop.permute.xlu0 %2729
        %2731 = vrot.lane.b32.xlu0 %v2566, 32
        %v2732 = vpop.permute.xlu0 %2731
        %2733 = vrot.lane.b32.xlu0 %v2572, 32
        %v2734 = vpop.permute.xlu0 %2733
        %2735 = vrot.lane.b32.xlu0 %v2578, 32
        %v2736 = vpop.permute.xlu0 %2735
        %2741 = vst.msk [vmem:[%s180 + $0x8] sm:$0xff] %vm2674, %v2730
        %2742 = vst.msk [vmem:[%s180 + $0x20] sm:$0xff] %vm2674, %v2732
        %2743 = vst.msk [vmem:[%s180 + $0x38] sm:$0xff] %vm2674, %v2734
        %2744 = vst.msk [vmem:[%s180 + $0x50] sm:$0xff] %vm2674, %v2736
        %2749 = vrot.lane.b32.xlu0 %v2584, 64
        %v2750 = vpop.permute.xlu0 %2749
        %2751 = vrot.lane.b32.xlu0 %v2590, 64
        %v2752 = vpop.permute.xlu0 %2751
        %2753 = vrot.lane.b32.xlu0 %v2596, 64
        %v2754 = vpop.permute.xlu0 %2753
        %2755 = vrot.lane.b32.xlu0 %v2602, 64
        %v2756 = vpop.permute.xlu0 %2755
        %2761 = vst.msk [vmem:[%s180 + $0x8] sm:$0xff] %vm2695, %v2750
        %2762 = vst.msk [vmem:[%s180 + $0x20] sm:$0xff] %vm2695, %v2752
        %2763 = vst.msk [vmem:[%s180 + $0x38] sm:$0xff] %vm2695, %v2754
        %2764 = vst.msk [vmem:[%s180 + $0x50] sm:$0xff] %vm2695, %v2756
        %2769 = vrot.lane.b32.xlu0 %v2608, 96
        %v2770 = vpop.permute.xlu0 %2769
        %2771 = vrot.lane.b32.xlu0 %v2614, 96
        %v2772 = vpop.permute.xlu0 %2771
        %2773 = vrot.lane.b32.xlu0 %v2620, 96
        %v2774 = vpop.permute.xlu0 %2773
        %2775 = vrot.lane.b32.xlu0 %v2626, 96
        %v2776 = vpop.permute.xlu0 %2775
        %2781 = vst.msk [vmem:[%s180 + $0x8] sm:$0xff] %vm2716, %v2770
        %2782 = vst.msk [vmem:[%s180 + $0x20] sm:$0xff] %vm2716, %v2772
        %2783 = vst.msk [vmem:[%s180 + $0x38] sm:$0xff] %vm2716, %v2774
        %2784 = vst.msk [vmem:[%s180 + $0x50] sm:$0xff] %vm2716, %v2776
        %2785 = vst.msk [vmem:[%s180 + $0x10] sm:$0xff] %vm2653, %v2632
        %2786 = vst.msk [vmem:[%s180 + $0x28] sm:$0xff] %vm2653, %v2638
        %2787 = vst.msk [vmem:[%s180 + $0x40] sm:$0xff] %vm2653, %v2644
        %2788 = vst.msk [vmem:[%s180 + $0x58] sm:$0xff] %vm2653, %v2650
        %v2789 = vld [vmem:[%s191] sm:$0xff]
        %v2790 = vld [vmem:[%s191 + $0x8] sm:$0xff]
        %v2791 = vld [vmem:[%s191 + $0x10] sm:$0xff]
        %v2792 = vld [vmem:[%s191 + $0x18] sm:$0xff]
        %v2793 = vrcp.pop 5.0
        %v2794 = vmul.f32 %v2789, %v2793
        %v2795 = vmul.f32 %v2790, %v2793
        %v2796 = vmul.f32 %v2791, %v2793
        %v2797 = vmul.f32 %v2792, %v2793
        %2802 = vrot.lane.b32.xlu0 %v2794, 32
        %v2803 = vpop.permute.xlu0 %2802
        %2804 = vrot.lane.b32.xlu0 %v2795, 32
        %v2805 = vpop.permute.xlu0 %2804
        %2806 = vrot.lane.b32.xlu0 %v2796, 32
        %v2807 = vpop.permute.xlu0 %2806
        %2808 = vrot.lane.b32.xlu0 %v2797, 32
        %v2809 = vpop.permute.xlu0 %2808
        %vm2814 = vcmask 326912
        %2815 = vst.msk [vmem:[%s180 + $0x10] sm:$0xff] %vm2814, %v2803
        %2816 = vst.msk [vmem:[%s180 + $0x28] sm:$0xff] %vm2814, %v2805
        %2817 = vst.msk [vmem:[%s180 + $0x40] sm:$0xff] %vm2814, %v2807
        %2818 = vst.msk [vmem:[%s180 + $0x58] sm:$0xff] %vm2814, %v2809
        %s2819 = sand.u32 %s98, 1
        %s2820 = scalar_lea.sflag [#allocation3], %s2819
        %s2821 = sand.u32 %s98, 1
        %s2822 = smul.addr %s2821, 96
        %s2823 = scalar_lea.vmem [#allocation2], %s2822
        // Predicated region
        $region33: #{tpu_custom_call.1} parent=31 // pred_check
          %p2824 = pneg %p108
        $region34: #{tpu_custom_call.1} parent=31 // pred_check_branch
          %2826 = sbr.rel (%p2824) target = $region36
        $region35: #{tpu_custom_call.1} parent=31 // pred_region
          %s2827 = smul.u32 4, %s17
          %s2829 = ssub.s32 1536, 1536
          %2830 = vsyncadd %s2820, %s2829
          %s2831 = smul.addr %s2827, 3
          %s2832 = smul.addr %s2831, 128
          %s2833 = scalar_lea.hbm %s3, %s2832
          %s2834 = sshll.u32 %s2823, 4
          %s2835 = int_to_ptr.vmem [resolvable:$true] %s2834
          %2840 = dma.vmem_to_hbm [thread:$0]  %s2835, 1536, %s2833, %s2820, 384, 384, 24
        $region36: #{tpu_custom_call.1} parent=31 // pred_fallthru
          _
      $region32: #{tpu_custom_call.1} parent=5 // pred_fallthru
        _
      %p2841 = scmp.le.s32.totalorder 2, %s12
      // Predicated region
      $region37: #{tpu_custom_call.1} parent=5 // pred_check
        %p2842 = pneg %p2841
      $region38: #{tpu_custom_call.1} parent=5 // pred_check_branch
        %2844 = sbr.rel (%p2842) target = $region40
      $region39: #{tpu_custom_call.1} parent=5 // pred_region
        %s2845 = ssub.s32 %s12, 2
        // Predicated region
        $region41: #{tpu_custom_call.1} parent=39 // pred_check
          %p2846 = pneg %p114
        $region42: #{tpu_custom_call.1} parent=39 // pred_check_branch
          %2848 = sbr.rel (%p2846) target = $region44
        $region43: #{tpu_custom_call.1} parent=39 // pred_region
          %s2849 = sand.u32 %s99, 1
          %s2850 = scalar_lea.sflag [#allocation3], %s2849
          %s2851 = sand.u32 %s99, 1
          %s2852 = smul.addr %s2851, 96
          %s2853 = scalar_lea.vmem [#allocation2], %s2852
          %2854 = dma.done %s2850, 1536
        $region44: #{tpu_custom_call.1} parent=39 // pred_fallthru
          _
      $region40: #{tpu_custom_call.1} parent=5 // pred_fallthru
        _
    $region6: #{tpu_custom_call.1} parent=1 // loop_footer
      %s16 = sadd.s32 1, %s12
    $region7: #{tpu_custom_call.1} parent=1 // loop_footer_branch
      %11 = sbr.rel target = $region3
    $region8: #{tpu_custom_call.1} parent=1 // loop_exit
      _
    %2855 = vsyncpa [#allocation3], 1
    %s2856 = scalar_lea.sflag [#allocation3], 1
    %2857 = vsyncpa %s2856, 1

</llo_original>
